<compile_context>
chip_gen: v6e
topology: v6e:2x2x1
jax: 0.10.0
libtpu: 0.0.40
codegen_flags: <defaults>
</compile_context>

<pallas_src>
import functools

import jax
import jax.numpy as jnp
from jax.experimental import pallas as pl
from jax.experimental.pallas import tpu as pltpu

# activation codes
ACT_NONE = 0
ACT_NONLIN = 1   # WIRE: exp(omega*x - sigma*|x|^2)  (real input -> |x|^2 = x*x)
ACT_RELU = 2


def _act_schedule(test, num_layers):
    """Per-layer activation codes, matching the PyTorch forward branches."""
    codes = []
    for l in range(num_layers):
        last = l == num_layers - 1
        if test == "in_arch":
            c = ACT_NONLIN if l == 0 else (ACT_NONE if last else ACT_RELU)
        elif test == "full":
            c = ACT_NONE if last else ACT_NONLIN
        elif test == "out":
            if l == num_layers - 2:
                c = ACT_NONLIN
            else:
                c = ACT_NONE if last else ACT_RELU
        elif test == "in2":
            if l in (0, 1):
                c = ACT_NONLIN
            else:
                c = ACT_NONE if last else ACT_RELU
        elif test == "even":
            if l in (0, 2, 4, 6, 8):
                c = ACT_NONLIN
            else:
                c = ACT_NONE if last else ACT_RELU
        else:
            raise ValueError(f"unsupported test mode: {test}")
        codes.append(c)
    return tuple(codes)


def _round_up(x, m):
    return -(-x // m) * m


def _apply_act(y, code, omega, sigma):
    if code == ACT_NONLIN:
        # exp(omega*y - sigma*y^2) == exp(y * (omega - sigma*y))  -> 3 VALU ops
        y = jnp.exp(y * (omega - sigma * y))
    elif code == ACT_RELU:
        y = jnp.maximum(y, 0.0)
    return y


def _older_than_v6():
    """True on TPU v2..v5 (128-wide MXU pass, 16 MiB default scoped VMEM)."""
    try:
        kind = jax.devices()[0].device_kind.lower()
    except Exception:
        return False
    return any(t in kind for t in ("v2", "v3", "v4", "v5"))


def _make_kernel(act_codes, omega, sigma, matmul_dtype):
    num_layers = len(act_codes)
    num_mid = num_layers - 2

    def layer(h, w, b, code):
        # matmul-dtype operands, f32 accumulation; bias add + act in f32;
        # producer-side cast so only one (tr, pack*hidden) slab is materialized.
        y = jnp.dot(h, w, preferred_element_type=jnp.float32) + b
        y = _apply_act(y, code, omega, sigma)
        return y.astype(matmul_dtype)

    def kernel(x_ref, w0_ref, b0_ref, wm_ref, bm_ref, wl_ref, bl_ref, o_ref):
        h = x_ref[...].astype(matmul_dtype)               # (tr, pack*in_dim)
        h = layer(h, w0_ref[...], b0_ref[...], act_codes[0])
        for l in range(num_mid):                          # static unroll
            h = layer(h, wm_ref[l], bm_ref[l], act_codes[l + 1])
        # Last layer: compute logits, apply its (usually identity) activation,
        # store lane-dense; sigmoid runs in the wrapper on the real lanes only.
        y = jnp.dot(h, wl_ref[...], preferred_element_type=jnp.float32) + bl_ref[...]
        y = _apply_act(y, act_codes[-1], omega, sigma)
        o_ref[...] = y.astype(o_ref.dtype)

    return kernel


def init_params(key, in_dim=6, hidden_dim=32, num_layers=8, rgb_dim=3, omega=20.0):
    """Mirrors NeuLFWireNetwork3.init_weights().

    Weights stored as (in, out) = torch weight transposed, ~ U(-const, const).
    Biases keep the default nn.Linear reset (U(+-1/sqrt(fan_in))), which
    init_weights leaves untouched.
    """
    params = []
    denom = max(0.001, omega)
    for l in range(num_layers):
        fan_in = in_dim if l == 0 else hidden_dim
        fan_out = rgb_dim if l == num_layers - 1 else hidden_dim
        const = (1.0 / in_dim) if l == 0 else (6.0 / hidden_dim) ** 0.5 / denom
        key, kw, kb = jax.random.split(key, 3)
        w = jax.random.uniform(kw, (fan_in, fan_out), jnp.float32, -const, const)
        b_bound = 1.0 / (fan_in ** 0.5)
        b = jax.random.uniform(kb, (1, fan_out), jnp.float32, -b_bound, b_bound)
        params.append((w, b))
    return params


def _pack_params(params, pack, rgb_pad, matmul_dtype):
    """Block-diagonal row packing: W' = kron(I_pack, W), b' = tile(b, pack).

    The last layer is zero-padded to rgb_pad output columns first so the
    packed output width (pack*rgb_pad) is lane-dense; padded columns are
    mathematically inert and sliced off by the wrapper.
    """
    eye = jnp.eye(pack, dtype=jnp.float32)

    def pack_w(w):
        return jnp.kron(eye, w).astype(matmul_dtype)

    def pack_b(b):
        return jnp.tile(b, (1, pack)).astype(jnp.float32)

    (w0, b0), mids, (wl, bl) = params[0], params[1:-1], params[-1]
    rgb_dim = wl.shape[1]
    wl = jnp.pad(wl, ((0, 0), (0, rgb_pad - rgb_dim)))
    bl = jnp.pad(bl, ((0, 0), (0, rgb_pad - rgb_dim)))

    w0p, b0p = pack_w(w0), pack_b(b0)
    wlp, blp = pack_w(wl), pack_b(bl)
    if mids:
        wmp = jnp.stack([pack_w(w) for (w, _) in mids])
        bmp = jnp.stack([pack_b(b) for (_, b) in mids])
    else:  # num_layers == 2: dummy (never indexed by the kernel)
        h = w0.shape[1]
        wmp = jnp.zeros((1, pack * h, pack * h), matmul_dtype)
        bmp = jnp.zeros((1, 1, pack * h), jnp.float32)
    return w0p, b0p, wmp, bmp, wlp, blp


def neulf_wire_forward(x, params, *, test="in_arch", omega=20.0, sigma=20.0,
                       tile_rows=None, matmul_dtype=jnp.bfloat16, pack=None,
                       mxu_pass_width=None, out_dtype=None):
    """x: (..., in_dim) float32. Returns (..., rgb_dim) float32 in (0, 1)."""
    num_layers = len(params)
    assert num_layers >= 2
    in_dim = x.shape[-1]
    hidden_dim = params[0][0].shape[1]
    rgb_dim = params[-1][0].shape[1]
    lead_shape = x.shape[:-1]

    old_gen = _older_than_v6()
    if mxu_pass_width is None:
        mxu_pass_width = 128 if old_gen else 256   # MXU tile width per pass
    if pack is None:
        pack = 1
        while pack * 2 * hidden_dim <= mxu_pass_width:
            pack *= 2
    if tile_rows is None:
        tile_rows = 2048 if old_gen else 4096
    if out_dtype is None:
        out_dtype = (jnp.float32
                     if jnp.dtype(matmul_dtype) == jnp.dtype(jnp.float32)
                     else jnp.bfloat16)
    rgb_pad = max(rgb_dim, max(1, 128 // pack))    # lane-dense packed output

    xf = x.reshape(-1, in_dim).astype(jnp.float32)
    n = xf.shape[0]
    n1 = _round_up(max(n, 1), pack)
    if n1 != n:
        xf = jnp.pad(xf, ((0, n1 - n), (0, 0)))
    n_rows = n1 // pack
    xp = xf.reshape(n_rows, pack * in_dim)

    # Balanced grid: even number of steps (2-way megacore split on v7x), each
    # step a multiple of 16 packed rows, minimal padding instead of rounding
    # n_rows up to a full tile_rows multiple.
    n_steps = pl.cdiv(n_rows, int(tile_rows))
    n_steps = max(2, n_steps + (n_steps % 2))
    tr = _round_up(pl.cdiv(n_rows, n_steps), 16)
    n_rows_pad = n_steps * tr
    if n_rows_pad != n_rows:
        xp = jnp.pad(xp, ((0, n_rows_pad - n_rows), (0, 0)))

    w0, b0, wm, bm, wl, bl = _pack_params(params, pack, rgb_pad, matmul_dtype)

    act_codes = _act_schedule(test, num_layers)
    kernel = _make_kernel(act_codes, float(omega), float(sigma), matmul_dtype)

    out_w = pack * rgb_pad

    def full(shape):  # whole-array resident block, constant index map
        return pl.BlockSpec(shape, lambda i, _n=len(shape): (0,) * _n)

    out = pl.pallas_call(
        kernel,
        out_shape=jax.ShapeDtypeStruct((n_rows_pad, out_w), out_dtype),
        grid_spec=pltpu.PrefetchScalarGridSpec(
            num_scalar_prefetch=0,
            grid=(n_steps,),
            in_specs=[
                pl.BlockSpec((tr, pack * in_dim), lambda i: (i, 0)),
                full(w0.shape), full(b0.shape),
                full(wm.shape), full(bm.shape),
                full(wl.shape), full(bl.shape),
            ],
            out_specs=pl.BlockSpec((tr, out_w), lambda i: (i, 0)),
        ),
        compiler_params=pltpu.CompilerParams(
            dimension_semantics=("parallel",),
            vmem_limit_bytes=None if old_gen else (40 << 20)),
    )(xp, w0, b0, wm, bm, wl, bl)

    out = out[:n_rows].reshape(n1, rgb_pad)[:n, :rgb_dim]
    # Sigmoid only on the real (n, rgb) lanes, in f32, in the wrapper's
    # existing un-pad/slice pass (padded lanes skip it entirely).
    out = jax.nn.sigmoid(out.astype(jnp.float32))
    return out.reshape(*lead_shape, rgb_dim)


def neulf_wire_forward_ref(x, params, *, test="in_arch", omega=20.0, sigma=20.0,
                           matmul_dtype=None, out_dtype=None):
    """Pure-JAX reference of the same torch forward branch.

    matmul_dtype=None -> plain f32 matmuls (module semantics).
    matmul_dtype=bf16 / out_dtype=bf16 -> same rounding schedule as the fast
    kernel path (bf16 matmul operands, f32 accumulation, producer-side bf16
    activations, bf16 output store).
    """
    codes = _act_schedule(test, len(params))
    last = len(params) - 1
    h = x.astype(jnp.float32)
    if matmul_dtype is not None:
        h = h.astype(matmul_dtype)
    for l, (w, b) in enumerate(params):
        wm = w if matmul_dtype is None else w.astype(matmul_dtype)
        y = jnp.dot(h, wm, preferred_element_type=jnp.float32) + b
        y = _apply_act(y, codes[l], omega, sigma)
        h = y if (matmul_dtype is None or l == last) else y.astype(matmul_dtype)
    if out_dtype is not None:
        h = h.astype(out_dtype).astype(jnp.float32)
    return jax.nn.sigmoid(h)


if __name__ == "__main__":
    # Small shapes: batch=2, rays=128, in_dim=6 (rays_o ++ rays_d), hidden=32.
    IN_DIM, HIDDEN, NUM_LAYERS, RGB = 6, 32, 8, 3
    OMEGA = SIGMA = 20.0

    key = jax.random.PRNGKey(0)
    key, kx = jax.random.split(key)
    x = jax.random.normal(kx, (2, 128, IN_DIM), jnp.float32) * 0.1

    params = init_params(key, in_dim=IN_DIM, hidden_dim=HIDDEN,
                         num_layers=NUM_LAYERS, rgb_dim=RGB, omega=OMEGA)

    ref_f32 = neulf_wire_forward_ref(x, params, test="in_arch",
                                     omega=OMEGA, sigma=SIGMA)

    # (1) exact-precision path: f32 matmuls / f32 store vs f32 reference.
    fwd_f32 = jax.jit(functools.partial(
        neulf_wire_forward, test="in_arch", omega=OMEGA, sigma=SIGMA,
        matmul_dtype=jnp.float32))
    out_f32 = jax.block_until_ready(fwd_f32(x, params))
    assert out_f32.shape == (2, 128, RGB), out_f32.shape
    err1 = float(jnp.max(jnp.abs(out_f32 - ref_f32)))
    assert err1 < 2e-4, err1

    # (2) fast path (bf16 operands + bf16 store) vs dtype-matched reference.
    fwd_bf16 = jax.jit(functools.partial(
        neulf_wire_forward, test="in_arch", omega=OMEGA, sigma=SIGMA,
        matmul_dtype=jnp.bfloat16))
    out_bf16 = jax.block_until_ready(fwd_bf16(x, params))
    assert out_bf16.shape == (2, 128, RGB), out_bf16.shape
    ref_bf16 = neulf_wire_forward_ref(x, params, test="in_arch", omega=OMEGA,
                                      sigma=SIGMA, matmul_dtype=jnp.bfloat16,
                                      out_dtype=jnp.bfloat16)
    err2 = float(jnp.max(jnp.abs(out_bf16 - ref_bf16)))
    assert err2 < 2e-3, err2

    # (3) exp-heavy mode ('full': 7 WIRE layers), dtype-matched bf16 check.
    fwd_full = jax.jit(functools.partial(
        neulf_wire_forward, test="full", omega=OMEGA, sigma=SIGMA,
        matmul_dtype=jnp.bfloat16))
    out_full = jax.block_until_ready(fwd_full(x, params))
    assert out_full.shape == (2, 128, RGB), out_full.shape
    ref_full = neulf_wire_forward_ref(x, params, test="full", omega=OMEGA,
                                      sigma=SIGMA, matmul_dtype=jnp.bfloat16,
                                      out_dtype=jnp.bfloat16)
    err3 = float(jnp.max(jnp.abs(out_full - ref_full)))
    assert err3 < 5e-3, err3

    # (4) fast path vs full-precision module semantics (loose sanity bound).
    err4 = float(jnp.max(jnp.abs(out_bf16 - ref_f32)))
    assert err4 < 5e-2, err4

    print("KERNEL_OK")
</pallas_src>

<mosaic_0001>
module attributes {stable_mosaic.version = 11 : i64} {
  func.func @kernel(%arg0: i32, %arg1: memref<16x48xf32, #tpu.memory_space<vmem>>, %arg2: memref<48x256xf32, #tpu.memory_space<vmem>>, %arg3: memref<1x256xf32, #tpu.memory_space<vmem>>, %arg4: memref<6x256x256xf32, #tpu.memory_space<vmem>>, %arg5: memref<6x1x256xf32, #tpu.memory_space<vmem>>, %arg6: memref<256x128xf32, #tpu.memory_space<vmem>>, %arg7: memref<1x128xf32, #tpu.memory_space<vmem>>, %arg8: memref<16x128xf32, #tpu.memory_space<vmem>>) attributes {dimension_semantics = [#tpu.dimension_semantics<parallel>], iteration_bounds = array<i64: 2>, scalar_prefetch = 0 : i64, scratch_operands = 0 : i64, tpu.core_type = #tpu.core_type<tc>, window_params = [{transform_indices = @transform_0, window_bounds = array<i64: 16, 48>}, {pipeline_mode = #tpu.pipeline_mode<synchronous>, transform_indices = @transform_1, window_bounds = array<i64: 48, 256>}, {pipeline_mode = #tpu.pipeline_mode<synchronous>, transform_indices = @transform_2, window_bounds = array<i64: 1, 256>}, {pipeline_mode = #tpu.pipeline_mode<synchronous>, transform_indices = @transform_3, window_bounds = array<i64: 6, 256, 256>}, {pipeline_mode = #tpu.pipeline_mode<synchronous>, transform_indices = @transform_4, window_bounds = array<i64: 6, 1, 256>}, {pipeline_mode = #tpu.pipeline_mode<synchronous>, transform_indices = @transform_5, window_bounds = array<i64: 256, 128>}, {pipeline_mode = #tpu.pipeline_mode<synchronous>, transform_indices = @transform_6, window_bounds = array<i64: 1, 128>}, {transform_indices = @transform_7, window_bounds = array<i64: 16, 128>}]} {
    %c0 = arith.constant 0 : index
    %c0_0 = arith.constant 0 : index
    %0 = vector.load %arg1[%c0, %c0_0] : memref<16x48xf32, #tpu.memory_space<vmem>>, vector<16x48xf32>
    %c0_1 = arith.constant 0 : index
    %c0_2 = arith.constant 0 : index
    %1 = vector.load %arg2[%c0_1, %c0_2] : memref<48x256xf32, #tpu.memory_space<vmem>>, vector<48x256xf32>
    %c0_3 = arith.constant 0 : index
    %c0_4 = arith.constant 0 : index
    %2 = vector.load %arg3[%c0_3, %c0_4] : memref<1x256xf32, #tpu.memory_space<vmem>>, vector<1x256xf32>
    %cst = arith.constant dense<0.000000e+00> : vector<16x256xf32>
    %3 = tpu.matmul %0, %1, %cst {dimension_numbers = #tpu.dot_dimension_numbers<[1], [0], [0], [1], [0, 0, 1, 1], [], []>} : vector<16x48xf32>, vector<48x256xf32>, vector<16x256xf32> -> vector<16x256xf32>
    %4 = vector.broadcast %2 : vector<1x256xf32> to vector<16x256xf32>
    %5 = arith.addf %3, %4 : vector<16x256xf32>
    %cst_5 = arith.constant 2.000000e+01 : f32
    %6 = vector.broadcast %cst_5 : f32 to vector<16x256xf32>
    %7 = arith.mulf %6, %5 : vector<16x256xf32>
    %cst_6 = arith.constant 2.000000e+01 : f32
    %8 = vector.broadcast %cst_6 : f32 to vector<16x256xf32>
    %9 = arith.subf %8, %7 : vector<16x256xf32>
    %10 = arith.mulf %5, %9 : vector<16x256xf32>
    %11 = math.exp %10 : vector<16x256xf32>
    %c0_7 = arith.constant 0 : index
    %c0_8 = arith.constant 0 : index
    %c0_9 = arith.constant 0 : index
    %12 = vector.load %arg4[%c0_7, %c0_8, %c0_9] : memref<6x256x256xf32, #tpu.memory_space<vmem>>, vector<1x256x256xf32>
    %13 = vector.shape_cast %12 : vector<1x256x256xf32> to vector<256x256xf32>
    %c0_10 = arith.constant 0 : index
    %c0_11 = arith.constant 0 : index
    %c0_12 = arith.constant 0 : index
    %14 = vector.load %arg5[%c0_10, %c0_11, %c0_12] : memref<6x1x256xf32, #tpu.memory_space<vmem>>, vector<1x1x256xf32>
    %15 = vector.shape_cast %14 : vector<1x1x256xf32> to vector<1x256xf32>
    %cst_13 = arith.constant dense<0.000000e+00> : vector<16x256xf32>
    %16 = tpu.matmul %11, %13, %cst_13 {dimension_numbers = #tpu.dot_dimension_numbers<[1], [0], [0], [1], [0, 0, 1, 1], [], []>} : vector<16x256xf32>, vector<256x256xf32>, vector<16x256xf32> -> vector<16x256xf32>
    %17 = vector.broadcast %15 : vector<1x256xf32> to vector<16x256xf32>
    %18 = arith.addf %16, %17 : vector<16x256xf32>
    %cst_14 = arith.constant 0.000000e+00 : f32
    %19 = vector.broadcast %cst_14 : f32 to vector<16x256xf32>
    %20 = arith.maximumf %18, %19 : vector<16x256xf32>
    %c1 = arith.constant 1 : index
    %c0_15 = arith.constant 0 : index
    %c0_16 = arith.constant 0 : index
    %21 = vector.load %arg4[%c1, %c0_15, %c0_16] : memref<6x256x256xf32, #tpu.memory_space<vmem>>, vector<1x256x256xf32>
    %22 = vector.shape_cast %21 : vector<1x256x256xf32> to vector<256x256xf32>
    %c1_17 = arith.constant 1 : index
    %c0_18 = arith.constant 0 : index
    %c0_19 = arith.constant 0 : index
    %23 = vector.load %arg5[%c1_17, %c0_18, %c0_19] : memref<6x1x256xf32, #tpu.memory_space<vmem>>, vector<1x1x256xf32>
    %24 = vector.shape_cast %23 : vector<1x1x256xf32> to vector<1x256xf32>
    %cst_20 = arith.constant dense<0.000000e+00> : vector<16x256xf32>
    %25 = tpu.matmul %20, %22, %cst_20 {dimension_numbers = #tpu.dot_dimension_numbers<[1], [0], [0], [1], [0, 0, 1, 1], [], []>} : vector<16x256xf32>, vector<256x256xf32>, vector<16x256xf32> -> vector<16x256xf32>
    %26 = vector.broadcast %24 : vector<1x256xf32> to vector<16x256xf32>
    %27 = arith.addf %25, %26 : vector<16x256xf32>
    %cst_21 = arith.constant 0.000000e+00 : f32
    %28 = vector.broadcast %cst_21 : f32 to vector<16x256xf32>
    %29 = arith.maximumf %27, %28 : vector<16x256xf32>
    %c2 = arith.constant 2 : index
    %c0_22 = arith.constant 0 : index
    %c0_23 = arith.constant 0 : index
    %30 = vector.load %arg4[%c2, %c0_22, %c0_23] : memref<6x256x256xf32, #tpu.memory_space<vmem>>, vector<1x256x256xf32>
    %31 = vector.shape_cast %30 : vector<1x256x256xf32> to vector<256x256xf32>
    %c2_24 = arith.constant 2 : index
    %c0_25 = arith.constant 0 : index
    %c0_26 = arith.constant 0 : index
    %32 = vector.load %arg5[%c2_24, %c0_25, %c0_26] : memref<6x1x256xf32, #tpu.memory_space<vmem>>, vector<1x1x256xf32>
    %33 = vector.shape_cast %32 : vector<1x1x256xf32> to vector<1x256xf32>
    %cst_27 = arith.constant dense<0.000000e+00> : vector<16x256xf32>
    %34 = tpu.matmul %29, %31, %cst_27 {dimension_numbers = #tpu.dot_dimension_numbers<[1], [0], [0], [1], [0, 0, 1, 1], [], []>} : vector<16x256xf32>, vector<256x256xf32>, vector<16x256xf32> -> vector<16x256xf32>
    %35 = vector.broadcast %33 : vector<1x256xf32> to vector<16x256xf32>
    %36 = arith.addf %34, %35 : vector<16x256xf32>
    %cst_28 = arith.constant 0.000000e+00 : f32
    %37 = vector.broadcast %cst_28 : f32 to vector<16x256xf32>
    %38 = arith.maximumf %36, %37 : vector<16x256xf32>
    %c3 = arith.constant 3 : index
    %c0_29 = arith.constant 0 : index
    %c0_30 = arith.constant 0 : index
    %39 = vector.load %arg4[%c3, %c0_29, %c0_30] : memref<6x256x256xf32, #tpu.memory_space<vmem>>, vector<1x256x256xf32>
    %40 = vector.shape_cast %39 : vector<1x256x256xf32> to vector<256x256xf32>
    %c3_31 = arith.constant 3 : index
    %c0_32 = arith.constant 0 : index
    %c0_33 = arith.constant 0 : index
    %41 = vector.load %arg5[%c3_31, %c0_32, %c0_33] : memref<6x1x256xf32, #tpu.memory_space<vmem>>, vector<1x1x256xf32>
    %42 = vector.shape_cast %41 : vector<1x1x256xf32> to vector<1x256xf32>
    %cst_34 = arith.constant dense<0.000000e+00> : vector<16x256xf32>
    %43 = tpu.matmul %38, %40, %cst_34 {dimension_numbers = #tpu.dot_dimension_numbers<[1], [0], [0], [1], [0, 0, 1, 1], [], []>} : vector<16x256xf32>, vector<256x256xf32>, vector<16x256xf32> -> vector<16x256xf32>
    %44 = vector.broadcast %42 : vector<1x256xf32> to vector<16x256xf32>
    %45 = arith.addf %43, %44 : vector<16x256xf32>
    %cst_35 = arith.constant 0.000000e+00 : f32
    %46 = vector.broadcast %cst_35 : f32 to vector<16x256xf32>
    %47 = arith.maximumf %45, %46 : vector<16x256xf32>
    %c4 = arith.constant 4 : index
    %c0_36 = arith.constant 0 : index
    %c0_37 = arith.constant 0 : index
    %48 = vector.load %arg4[%c4, %c0_36, %c0_37] : memref<6x256x256xf32, #tpu.memory_space<vmem>>, vector<1x256x256xf32>
    %49 = vector.shape_cast %48 : vector<1x256x256xf32> to vector<256x256xf32>
    %c4_38 = arith.constant 4 : index
    %c0_39 = arith.constant 0 : index
    %c0_40 = arith.constant 0 : index
    %50 = vector.load %arg5[%c4_38, %c0_39, %c0_40] : memref<6x1x256xf32, #tpu.memory_space<vmem>>, vector<1x1x256xf32>
    %51 = vector.shape_cast %50 : vector<1x1x256xf32> to vector<1x256xf32>
    %cst_41 = arith.constant dense<0.000000e+00> : vector<16x256xf32>
    %52 = tpu.matmul %47, %49, %cst_41 {dimension_numbers = #tpu.dot_dimension_numbers<[1], [0], [0], [1], [0, 0, 1, 1], [], []>} : vector<16x256xf32>, vector<256x256xf32>, vector<16x256xf32> -> vector<16x256xf32>
    %53 = vector.broadcast %51 : vector<1x256xf32> to vector<16x256xf32>
    %54 = arith.addf %52, %53 : vector<16x256xf32>
    %cst_42 = arith.constant 0.000000e+00 : f32
    %55 = vector.broadcast %cst_42 : f32 to vector<16x256xf32>
    %56 = arith.maximumf %54, %55 : vector<16x256xf32>
    %c5 = arith.constant 5 : index
    %c0_43 = arith.constant 0 : index
    %c0_44 = arith.constant 0 : index
    %57 = vector.load %arg4[%c5, %c0_43, %c0_44] : memref<6x256x256xf32, #tpu.memory_space<vmem>>, vector<1x256x256xf32>
    %58 = vector.shape_cast %57 : vector<1x256x256xf32> to vector<256x256xf32>
    %c5_45 = arith.constant 5 : index
    %c0_46 = arith.constant 0 : index
    %c0_47 = arith.constant 0 : index
    %59 = vector.load %arg5[%c5_45, %c0_46, %c0_47] : memref<6x1x256xf32, #tpu.memory_space<vmem>>, vector<1x1x256xf32>
    %60 = vector.shape_cast %59 : vector<1x1x256xf32> to vector<1x256xf32>
    %cst_48 = arith.constant dense<0.000000e+00> : vector<16x256xf32>
    %61 = tpu.matmul %56, %58, %cst_48 {dimension_numbers = #tpu.dot_dimension_numbers<[1], [0], [0], [1], [0, 0, 1, 1], [], []>} : vector<16x256xf32>, vector<256x256xf32>, vector<16x256xf32> -> vector<16x256xf32>
    %62 = vector.broadcast %60 : vector<1x256xf32> to vector<16x256xf32>
    %63 = arith.addf %61, %62 : vector<16x256xf32>
    %cst_49 = arith.constant 0.000000e+00 : f32
    %64 = vector.broadcast %cst_49 : f32 to vector<16x256xf32>
    %65 = arith.maximumf %63, %64 : vector<16x256xf32>
    %c0_50 = arith.constant 0 : index
    %c0_51 = arith.constant 0 : index
    %66 = vector.load %arg6[%c0_50, %c0_51] : memref<256x128xf32, #tpu.memory_space<vmem>>, vector<256x128xf32>
    %cst_52 = arith.constant dense<0.000000e+00> : vector<16x128xf32>
    %67 = tpu.matmul %65, %66, %cst_52 {dimension_numbers = #tpu.dot_dimension_numbers<[1], [0], [0], [1], [0, 0, 1, 1], [], []>} : vector<16x256xf32>, vector<256x128xf32>, vector<16x128xf32> -> vector<16x128xf32>
    %c0_53 = arith.constant 0 : index
    %c0_54 = arith.constant 0 : index
    %68 = vector.load %arg7[%c0_53, %c0_54] : memref<1x128xf32, #tpu.memory_space<vmem>>, vector<1x128xf32>
    %69 = vector.broadcast %68 : vector<1x128xf32> to vector<16x128xf32>
    %70 = arith.addf %67, %69 : vector<16x128xf32>
    %c0_55 = arith.constant 0 : index
    %c0_56 = arith.constant 0 : index
    %71 = vector.load %arg8[%c0_55, %c0_56] : memref<16x128xf32, #tpu.memory_space<vmem>>, vector<16x128xf32>
    tpu.vector_store %arg8[%c0_55, %c0_56], %70 {strides = array<i32>} : memref<16x128xf32, #tpu.memory_space<vmem>>, vector<16x128xf32>,
    return
  }
  func.func @transform_0(%arg0: i32) -> (i32, i32) {
    %c0_i32 = arith.constant 0 : i32
    %c0_i32_0 = arith.constant 0 : i32
    return %arg0, %c0_i32 : i32, i32
  }
  func.func @transform_1(%arg0: i32) -> (i32, i32) {
    %c0_i32 = arith.constant 0 : i32
    %c0_i32_0 = arith.constant 0 : i32
    %c0_i32_1 = arith.constant 0 : i32
    return %c0_i32, %c0_i32_0 : i32, i32
  }
  func.func @transform_2(%arg0: i32) -> (i32, i32) {
    %c0_i32 = arith.constant 0 : i32
    %c0_i32_0 = arith.constant 0 : i32
    %c0_i32_1 = arith.constant 0 : i32
    return %c0_i32, %c0_i32_0 : i32, i32
  }
  func.func @transform_3(%arg0: i32) -> (i32, i32, i32) {
    %c0_i32 = arith.constant 0 : i32
    %c0_i32_0 = arith.constant 0 : i32
    %c0_i32_1 = arith.constant 0 : i32
    %c0_i32_2 = arith.constant 0 : i32
    return %c0_i32, %c0_i32_0, %c0_i32_1 : i32, i32, i32
  }
  func.func @transform_4(%arg0: i32) -> (i32, i32, i32) {
    %c0_i32 = arith.constant 0 : i32
    %c0_i32_0 = arith.constant 0 : i32
    %c0_i32_1 = arith.constant 0 : i32
    %c0_i32_2 = arith.constant 0 : i32
    return %c0_i32, %c0_i32_0, %c0_i32_1 : i32, i32, i32
  }
  func.func @transform_5(%arg0: i32) -> (i32, i32) {
    %c0_i32 = arith.constant 0 : i32
    %c0_i32_0 = arith.constant 0 : i32
    %c0_i32_1 = arith.constant 0 : i32
    return %c0_i32, %c0_i32_0 : i32, i32
  }
  func.func @transform_6(%arg0: i32) -> (i32, i32) {
    %c0_i32 = arith.constant 0 : i32
    %c0_i32_0 = arith.constant 0 : i32
    %c0_i32_1 = arith.constant 0 : i32
    return %c0_i32, %c0_i32_0 : i32, i32
  }
  func.func @transform_7(%arg0: i32) -> (i32, i32) {
    %c0_i32 = arith.constant 0 : i32
    %c0_i32_0 = arith.constant 0 : i32
    return %arg0, %c0_i32 : i32, i32
  }
}

</mosaic_0001>

<llo_original>
// kernel: neulf_wire_forward.1
$region0: #{neulf_wire_forward.1}
  #allocation0 [shape = 'u32[]', space=smem, size = 0x4, offset = 0x4, fixed_abs, tag = 'smem constant byte address 0x4 - core index']
  #allocation1 [shape = 'u32[144,128]{1,0:T(1,128)}', space=vmem, size = 0x12000, scoped, tag = 'internal scratch']
  %s0 = inlined_call_operand.vmem [shape: f32[32,48], index: 0, kind: input, shape index: {}]
  %s1 = inlined_call_operand.vmem [shape: f32[48,256], index: 1, kind: input, shape index: {}]
  %s2 = inlined_call_operand.vmem [shape: f32[1,256], index: 2, kind: input, shape index: {}]
  %s3 = inlined_call_operand.vmem [shape: f32[6,256,256], index: 3, kind: input, shape index: {}]
  %s4 = inlined_call_operand.vmem [shape: f32[6,1,256], index: 4, kind: input, shape index: {}]
  %s5 = inlined_call_operand.vmem [shape: f32[256,128], index: 5, kind: input, shape index: {}]
  %s6 = inlined_call_operand.vmem [shape: f32[1,128], index: 6, kind: input, shape index: {}]
  %s7 = inlined_call_operand.vmem [shape: f32[32,128], index: 7, kind: output, shape index: {}]
  %s8 = sld [smem:[#allocation0]]
  $region61: #{neulf_wire_forward.1} parent=0
    _
  %s10 = ssub.s32 1, %s8
  %s11 = scalar_select 0, %s10, %s8
  loop: start=0, step=1, limit=4
  $region2: #{neulf_wire_forward.1} parent=0 // loop_pre_header
    _
  $region3: #{neulf_wire_forward.1} parent=0 // loop_header
    %s13 = sphi 0, %s17
    %p14 = scmp.ge.s32.totalorder %s13, 4
    %s23 = sphi 0, %s25
    %s26 = sphi 0, %s23
    %s27 = sphi 0, %s26
    %s43 = sphi 0, %s27
    %s47 = sphi 0, %s47
    %s49 = sphi 0, %s47
    %s50 = sphi 0, %s49
    %s64 = sphi 0, %s50
    %s68 = sphi 0, %s68
    %s70 = sphi 0, %s68
    %s71 = sphi 0, %s70
    %s85 = sphi 0, %s71
    %s89 = sphi 0, %s89
    %s91 = sphi 0, %s89
    %s92 = sphi 0, %s91
    %s106 = sphi 0, %s92
    %s110 = sphi 0, %s110
    %s112 = sphi 0, %s110
    %s113 = sphi 0, %s112
    %s127 = sphi 0, %s113
    %s131 = sphi 0, %s131
    %s133 = sphi 0, %s131
    %s134 = sphi 0, %s133
    %s148 = sphi 0, %s134
    %s152 = sphi 0, %s152
    %s154 = sphi 0, %s152
    %s155 = sphi 0, %s154
    %s169 = sphi 0, %s155
    %s175 = sphi 0, %s177
    %s178 = sphi 0, %s175
    %s179 = sphi 0, %s178
    %s195 = sphi 0, %s179
  $region4: #{neulf_wire_forward.1} parent=0 // loop_header_branch
    %16 = sbr.rel (%p14) target = $region8
  $region5: #{neulf_wire_forward.1} parent=0 // loop_body
    %s18 = ssub.s32 %s13, 1
    %s19 = ssub.s32 %s13, 2
    %s20 = sadd.s32 %s13, 1
    %s21 = ssub.s32 %s13, %s20
    %p22 = scmp.eq.s32.totalorder %s21, 0
    %s24 = sadd.s32 %s23, 1
    %s25 = scalar_select %p22, %s23, %s24
    %p28 = pneg %p22
    %p29 = scmp.eq.s32.totalorder %s13, 1
    %p30 = por %p28, %p29
    %p31 = scmp.ne.s32.totalorder %s23, %s26
    %p32 = scmp.eq.s32.totalorder %s13, 0
    %p33 = por %p31, %p32
    %p34 = scmp.ne.s32.totalorder %s23, %s26
    %p35 = scmp.eq.s32.totalorder %s18, 1
    %p36 = por %p34, %p35
    %p37 = scmp.ne.s32.totalorder %s26, %s27
    %p38 = scmp.eq.s32.totalorder %s18, 0
    %p39 = por %p37, %p38
    %p40 = scmp.ne.s32.totalorder %s26, %s27
    %p41 = scmp.eq.s32.totalorder %s19, 1
    %p42 = por %p40, %p41
    %p44 = scmp.ne.s32.totalorder %s27, %s43
    %p45 = scmp.eq.s32.totalorder %s19, 0
    %p46 = por %p44, %p45
    %s48 = sadd.s32 %s47, 1
    %p51 = scmp.eq.s32.totalorder %s13, 1
    %p52 = scmp.ne.s32.totalorder %s47, %s49
    %p53 = scmp.eq.s32.totalorder %s13, 0
    %p54 = por %p52, %p53
    %p55 = scmp.ne.s32.totalorder %s47, %s49
    %p56 = scmp.eq.s32.totalorder %s18, 1
    %p57 = por %p55, %p56
    %p58 = scmp.ne.s32.totalorder %s49, %s50
    %p59 = scmp.eq.s32.totalorder %s18, 0
    %p60 = por %p58, %p59
    %p61 = scmp.ne.s32.totalorder %s49, %s50
    %p62 = scmp.eq.s32.totalorder %s19, 1
    %p63 = por %p61, %p62
    %p65 = scmp.ne.s32.totalorder %s50, %s64
    %p66 = scmp.eq.s32.totalorder %s19, 0
    %p67 = por %p65, %p66
    %s69 = sadd.s32 %s68, 1
    %p72 = scmp.eq.s32.totalorder %s13, 1
    %p73 = scmp.ne.s32.totalorder %s68, %s70
    %p74 = scmp.eq.s32.totalorder %s13, 0
    %p75 = por %p73, %p74
    %p76 = scmp.ne.s32.totalorder %s68, %s70
    %p77 = scmp.eq.s32.totalorder %s18, 1
    %p78 = por %p76, %p77
    %p79 = scmp.ne.s32.totalorder %s70, %s71
    %p80 = scmp.eq.s32.totalorder %s18, 0
    %p81 = por %p79, %p80
    %p82 = scmp.ne.s32.totalorder %s70, %s71
    %p83 = scmp.eq.s32.totalorder %s19, 1
    %p84 = por %p82, %p83
    %p86 = scmp.ne.s32.totalorder %s71, %s85
    %p87 = scmp.eq.s32.totalorder %s19, 0
    %p88 = por %p86, %p87
    %s90 = sadd.s32 %s89, 1
    %p93 = scmp.eq.s32.totalorder %s13, 1
    %p94 = scmp.ne.s32.totalorder %s89, %s91
    %p95 = scmp.eq.s32.totalorder %s13, 0
    %p96 = por %p94, %p95
    %p97 = scmp.ne.s32.totalorder %s89, %s91
    %p98 = scmp.eq.s32.totalorder %s18, 1
    %p99 = por %p97, %p98
    %p100 = scmp.ne.s32.totalorder %s91, %s92
    %p101 = scmp.eq.s32.totalorder %s18, 0
    %p102 = por %p100, %p101
    %p103 = scmp.ne.s32.totalorder %s91, %s92
    %p104 = scmp.eq.s32.totalorder %s19, 1
    %p105 = por %p103, %p104
    %p107 = scmp.ne.s32.totalorder %s92, %s106
    %p108 = scmp.eq.s32.totalorder %s19, 0
    %p109 = por %p107, %p108
    %s111 = sadd.s32 %s110, 1
    %p114 = scmp.eq.s32.totalorder %s13, 1
    %p115 = scmp.ne.s32.totalorder %s110, %s112
    %p116 = scmp.eq.s32.totalorder %s13, 0
    %p117 = por %p115, %p116
    %p118 = scmp.ne.s32.totalorder %s110, %s112
    %p119 = scmp.eq.s32.totalorder %s18, 1
    %p120 = por %p118, %p119
    %p121 = scmp.ne.s32.totalorder %s112, %s113
    %p122 = scmp.eq.s32.totalorder %s18, 0
    %p123 = por %p121, %p122
    %p124 = scmp.ne.s32.totalorder %s112, %s113
    %p125 = scmp.eq.s32.totalorder %s19, 1
    %p126 = por %p124, %p125
    %p128 = scmp.ne.s32.totalorder %s113, %s127
    %p129 = scmp.eq.s32.totalorder %s19, 0
    %p130 = por %p128, %p129
    %s132 = sadd.s32 %s131, 1
    %p135 = scmp.eq.s32.totalorder %s13, 1
    %p136 = scmp.ne.s32.totalorder %s131, %s133
    %p137 = scmp.eq.s32.totalorder %s13, 0
    %p138 = por %p136, %p137
    %p139 = scmp.ne.s32.totalorder %s131, %s133
    %p140 = scmp.eq.s32.totalorder %s18, 1
    %p141 = por %p139, %p140
    %p142 = scmp.ne.s32.totalorder %s133, %s134
    %p143 = scmp.eq.s32.totalorder %s18, 0
    %p144 = por %p142, %p143
    %p145 = scmp.ne.s32.totalorder %s133, %s134
    %p146 = scmp.eq.s32.totalorder %s19, 1
    %p147 = por %p145, %p146
    %p149 = scmp.ne.s32.totalorder %s134, %s148
    %p150 = scmp.eq.s32.totalorder %s19, 0
    %p151 = por %p149, %p150
    %s153 = sadd.s32 %s152, 1
    %p156 = scmp.eq.s32.totalorder %s13, 1
    %p157 = scmp.ne.s32.totalorder %s152, %s154
    %p158 = scmp.eq.s32.totalorder %s13, 0
    %p159 = por %p157, %p158
    %p160 = scmp.ne.s32.totalorder %s152, %s154
    %p161 = scmp.eq.s32.totalorder %s18, 1
    %p162 = por %p160, %p161
    %p163 = scmp.ne.s32.totalorder %s154, %s155
    %p164 = scmp.eq.s32.totalorder %s18, 0
    %p165 = por %p163, %p164
    %p166 = scmp.ne.s32.totalorder %s154, %s155
    %p167 = scmp.eq.s32.totalorder %s19, 1
    %p168 = por %p166, %p167
    %p170 = scmp.ne.s32.totalorder %s155, %s169
    %p171 = scmp.eq.s32.totalorder %s19, 0
    %p172 = por %p170, %p171
    %s173 = ssub.s32 %s13, %s20
    %p174 = scmp.eq.s32.totalorder %s173, 0
    %s176 = sadd.s32 %s175, 1
    %s177 = scalar_select %p174, %s175, %s176
    %p180 = pneg %p174
    %p181 = scmp.eq.s32.totalorder %s13, 1
    %p182 = por %p180, %p181
    %p183 = scmp.ne.s32.totalorder %s175, %s178
    %p184 = scmp.eq.s32.totalorder %s13, 0
    %p185 = por %p183, %p184
    %p186 = scmp.ne.s32.totalorder %s175, %s178
    %p187 = scmp.eq.s32.totalorder %s18, 1
    %p188 = por %p186, %p187
    %p189 = scmp.ne.s32.totalorder %s178, %s179
    %p190 = scmp.eq.s32.totalorder %s18, 0
    %p191 = por %p189, %p190
    %p192 = scmp.ne.s32.totalorder %s178, %s179
    %p193 = scmp.eq.s32.totalorder %s19, 1
    %p194 = por %p192, %p193
    %p196 = scmp.ne.s32.totalorder %s179, %s195
    %p197 = scmp.eq.s32.totalorder %s19, 0
    %p198 = por %p196, %p197
    %p199 = scmp.le.s32.totalorder 1, %s13
    %p200 = scmp.lt.s32.totalorder %s13, 3
    %p201 = pnand %p199, %p200
    %p202 = pneg %p201
    // Predicated region
    $region9: #{neulf_wire_forward.1} parent=5 // pred_check
      _
    $region10: #{neulf_wire_forward.1} parent=5 // pred_check_branch
      %204 = sbr.rel (%p201) target = $region12
    $region11: #{neulf_wire_forward.1} parent=5 // pred_region
      %s205 = ssub.s32 %s13, 1
      // Predicated region
      $region13: #{neulf_wire_forward.1} parent=11 // pred_check
        %p206 = pneg %p60
      $region14: #{neulf_wire_forward.1} parent=11 // pred_check_branch
        %208 = sbr.rel (%p206) target = $region16
      $region15: #{neulf_wire_forward.1} parent=11 // pred_region
        _
      $region16: #{neulf_wire_forward.1} parent=11 // pred_fallthru
        _
      // Predicated region
      $region17: #{neulf_wire_forward.1} parent=11 // pred_check
        %p209 = pneg %p81
      $region18: #{neulf_wire_forward.1} parent=11 // pred_check_branch
        %211 = sbr.rel (%p209) target = $region20
      $region19: #{neulf_wire_forward.1} parent=11 // pred_region
        _
      $region20: #{neulf_wire_forward.1} parent=11 // pred_fallthru
        _
      // Predicated region
      $region21: #{neulf_wire_forward.1} parent=11 // pred_check
        %p212 = pneg %p102
      $region22: #{neulf_wire_forward.1} parent=11 // pred_check_branch
        %214 = sbr.rel (%p212) target = $region24
      $region23: #{neulf_wire_forward.1} parent=11 // pred_region
        _
      $region24: #{neulf_wire_forward.1} parent=11 // pred_fallthru
        _
      // Predicated region
      $region25: #{neulf_wire_forward.1} parent=11 // pred_check
        %p215 = pneg %p123
      $region26: #{neulf_wire_forward.1} parent=11 // pred_check_branch
        %217 = sbr.rel (%p215) target = $region28
      $region27: #{neulf_wire_forward.1} parent=11 // pred_region
        _
      $region28: #{neulf_wire_forward.1} parent=11 // pred_fallthru
        _
      // Predicated region
      $region29: #{neulf_wire_forward.1} parent=11 // pred_check
        %p218 = pneg %p144
      $region30: #{neulf_wire_forward.1} parent=11 // pred_check_branch
        %220 = sbr.rel (%p218) target = $region32
      $region31: #{neulf_wire_forward.1} parent=11 // pred_region
        _
      $region32: #{neulf_wire_forward.1} parent=11 // pred_fallthru
        _
      // Predicated region
      $region33: #{neulf_wire_forward.1} parent=11 // pred_check
        %p221 = pneg %p165
      $region34: #{neulf_wire_forward.1} parent=11 // pred_check_branch
        %223 = sbr.rel (%p221) target = $region36
      $region35: #{neulf_wire_forward.1} parent=11 // pred_region
        _
      $region36: #{neulf_wire_forward.1} parent=11 // pred_fallthru
        _
    $region12: #{neulf_wire_forward.1} parent=5 // pred_fallthru
      _
    %p224 = scmp.lt.s32.totalorder %s13, 2
    // Predicated region
    $region37: #{neulf_wire_forward.1} parent=5 // pred_check
      %p225 = pneg %p224
    $region38: #{neulf_wire_forward.1} parent=5 // pred_check_branch
      %227 = sbr.rel (%p225) target = $region40
    $region39: #{neulf_wire_forward.1} parent=5 // pred_region
      // Predicated region
      $region41: #{neulf_wire_forward.1} parent=39 // pred_check
        %p228 = pneg %p33
      $region42: #{neulf_wire_forward.1} parent=39 // pred_check_branch
        %230 = sbr.rel (%p228) target = $region44
      $region43: #{neulf_wire_forward.1} parent=39 // pred_region
        %s231 = smul.u32 2, %s13
        %p232 = scmp.lt.s32.totalorder %s231, 3
        %s233 = scalar_select %p232, %s231, 3
        %s234 = smul.addr %s233, 8
        %s235 = scalar_lea.vmem %s0, %s234
        %s236 = smul.u32 2, %s13
      $region44: #{neulf_wire_forward.1} parent=39 // pred_fallthru
        _
    $region40: #{neulf_wire_forward.1} parent=5 // pred_fallthru
      _
    %p237 = scmp.le.s32.totalorder 1, %s13
    %p238 = scmp.lt.s32.totalorder %s13, 3
    %p239 = pnand %p237, %p238
    %p240 = pneg %p239
    // Predicated region
    $region45: #{neulf_wire_forward.1} parent=5 // pred_check
      _
    $region46: #{neulf_wire_forward.1} parent=5 // pred_check_branch
      %242 = sbr.rel (%p239) target = $region48
    $region47: #{neulf_wire_forward.1} parent=5 // pred_region
      %s243 = ssub.s32 %s13, 1
      %s244 = smul.u32 2, %s18
      %p245 = scmp.lt.s32.totalorder %s244, 3
      %s246 = scalar_select %p245, %s244, 3
      %s247 = smul.addr %s246, 8
      %s248 = scalar_lea.vmem %s0, %s247
      %p249 = pneg %p39
      %p250 = pneg %p36
      %p251 = pneg %p60
      %p252 = pneg %p57
      %p253 = pneg %p81
      %p254 = pneg %p78
      %p255 = pneg %p102
      %p256 = pneg %p99
      %p257 = pneg %p123
      %p258 = pneg %p120
      %p259 = pneg %p144
      %p260 = pneg %p141
      %p261 = pneg %p165
      %p262 = pneg %p162
      %p263 = pneg %p191
      %p264 = pneg %p188
      %s265 = smul.u32 2, %s18
      %p266 = scmp.lt.s32.totalorder %s265, 3
      %s267 = scalar_select %p266, %s265, 3
      %s268 = smul.addr %s267, 8
      %s269 = scalar_lea.vmem %s7, %s268
      %s270 = smul.u32 2, %s18
      %p271 = scmp.lt.s32.totalorder %s270, 3
      %s272 = scalar_select %p271, %s270, 3
      %s273 = smul.addr %s272, 8
      %s274 = scalar_lea.vmem %s0, %s273
      %s275 = smul.u32 2, %s18
      %s276 = smul.u32 2, %s18
      %p277 = scmp.lt.s32.totalorder %s276, 3
      %s278 = scalar_select %p277, %s276, 3
      %s279 = smul.addr %s278, 8
      %s280 = scalar_lea.vmem %s7, %s279
      %s281 = smul.u32 2, %s18
      %v282 = vld [vmem:[%s274] sm:$0xff]
      %v283 = vld [vmem:[%s274 + $0x8] sm:$0xff]
      %v284 = vld [vmem:[%s1] sm:$0xff]
      %v285 = vld [vmem:[%s1 + $0x8] sm:$0xff]
      %v286 = vld [vmem:[%s1 + $0x10] sm:$0xff]
      %v287 = vld [vmem:[%s1 + $0x18] sm:$0xff]
      %v288 = vld [vmem:[%s1 + $0x20] sm:$0xff]
      %v289 = vld [vmem:[%s1 + $0x28] sm:$0xff]
      %v290 = vld [vmem:[%s1 + $0x30] sm:$0xff]
      %v291 = vld [vmem:[%s1 + $0x38] sm:$0xff]
      %v292 = vld [vmem:[%s1 + $0x40] sm:$0xff]
      %v293 = vld [vmem:[%s1 + $0x48] sm:$0xff]
      %v294 = vld [vmem:[%s1 + $0x50] sm:$0xff]
      %v295 = vld [vmem:[%s1 + $0x58] sm:$0xff]
      %v296 = vld [vmem:[%s2] sm:$0x3]
      %v298 = vlaneseq
      %v299 = vshrl.u32 %v298, 7
      %v300 = vsub.s32 0, %v299
      %v301 = vrot.slane %v296, %v300
      %v302 = vlaneseq
      %v303 = vshrl.u32 %v302, 7
      %v304 = vsub.s32 1, %v303
      %v305 = vrot.slane %v296, %v304
      %vm308 = vcmask 392192
      %v310 = vsel %vm308, %v282, 0
      %v313 = vsel %vm308, %v283, 0
      %315 = vmatprep.subr.mxu0 0.0
      %316 = vmatpush1.msra.mxu0 0.0
      %317 = vmatprep.subr.mxu0 0.0
      %318 = vmatpush1.msra.mxu0 0.0
      %319 = vmatprep.subr.mxu0 0.0
      %320 = vmatpush1.msra.mxu0 0.0
      %321 = vmatprep.subr.mxu0 0.0
      %322 = vmatpush1.msra.mxu0 0.0
      %323 = vmatprep.subr.mxu0 0.0
      %324 = vmatpush1.msra.mxu0 0.0
      %325 = vmatprep.subr.mxu0 0.0
      %326 = vmatpush1.msra.mxu0 0.0
      %327 = vmatprep.subr.mxu0 0.0
      %328 = vmatpush1.msra.mxu0 0.0
      %329 = vmatprep.subr.mxu0 0.0
      %330 = vmatpush1.msra.mxu0 0.0
      %331 = vmatprep.subr.mxu0 0.0
      %332 = vmatpush1.msra.mxu0 0.0
      %333 = vmatprep.subr.mxu0 0.0
      %334 = vmatpush1.msra.mxu0 0.0
      %335 = vmatprep.subr.mxu0 %v295
      %336 = vmatpush1.msra.mxu0 %v294
      %337 = vmatprep.subr.mxu0 %v293
      %338 = vmatpush1.msra.mxu0 %v292
      %339 = vmatprep.subr.mxu0 %v291
      %340 = vmatpush1.msra.mxu0 %v290
      %341 = vmatprep.subr.mxu0 %v289
      %342 = vmatpush1.msra.mxu0 %v288
      %343 = vmatprep.subr.mxu0 %v287
      %344 = vmatpush1.msra.mxu0 %v286
      %345 = vmatprep.subr.mxu0 %v285
      %346 = vmatpush1.msra.mxu0 %v284
      %347 = vmatprep.subr.mxu0 0.0
      %348 = vmatpush2.msra.mxu0 0.0
      %349 = vmatprep.subr.mxu0 0.0
      %350 = vmatpush2.msra.mxu0 0.0
      %351 = vmatprep.subr.mxu0 0.0
      %352 = vmatpush2.msra.mxu0 0.0
      %353 = vmatprep.subr.mxu0 0.0
      %354 = vmatpush2.msra.mxu0 0.0
      %355 = vmatprep.subr.mxu0 0.0
      %356 = vmatpush2.msra.mxu0 0.0
      %357 = vmatprep.subr.mxu0 0.0
      %358 = vmatpush2.msra.mxu0 0.0
      %359 = vmatprep.subr.mxu0 0.0
      %360 = vmatpush2.msra.mxu0 0.0
      %361 = vmatprep.subr.mxu0 0.0
      %362 = vmatpush2.msra.mxu0 0.0
      %363 = vmatprep.subr.mxu0 0.0
      %364 = vmatpush2.msra.mxu0 0.0
      %365 = vmatprep.subr.mxu0 0.0
      %366 = vmatpush2.msra.mxu0 0.0
      %367 = vmatprep.subr.mxu0 0.0
      %368 = vmatpush2.msra.mxu0 0.0
      %369 = vmatprep.subr.mxu0 0.0
      %370 = vmatpush2.msra.mxu0 0.0
      %371 = vmatprep.subr.mxu0 0.0
      %372 = vmatpush2.msra.mxu0 0.0
      %373 = vmatprep.subr.mxu0 0.0
      %374 = vmatpush2.msra.mxu0 0.0
      %375 = vmatprep.subr.mxu0 0.0
      %376 = vmatpush2.msra.mxu0 0.0
      %377 = vmatprep.subr.mxu0 0.0
      %378 = vmatpush2.msra.mxu0 0.0
      %379 = vmatprep.mubr.f32.mxu0 0.0
      %380 = vmatmul.mubr.f32.gmra.mxu0 %v310
      %v381 = vpop.f32.mrf.mxu0
      %v382 = vadd.f32 %v301, %v381
      %v383 = vpop.f32.mrf.mxu0
      %v384 = vadd.f32 %v305, %v383
      %385 = vmatprep.mubr.f32.mxu0 0.0
      %386 = vmatmul.mubr.f32.gmra.mxu0 %v313
      %v387 = vpop.f32.mrf.mxu0
      %v388 = vadd.f32 %v301, %v387
      %v389 = vpop.f32.mrf.mxu0
      %v390 = vadd.f32 %v305, %v389
      %391 = vdwg.mxu0
      %v392 = vmul.f32 %v382, 20.0
      %v393 = vmul.f32 %v384, 20.0
      %v394 = vmul.f32 %v388, 20.0
      %v395 = vmul.f32 %v390, 20.0
      %v396 = vsub.f32 20.0, %v392
      %v397 = vsub.f32 20.0, %v393
      %v398 = vsub.f32 20.0, %v394
      %v399 = vsub.f32 20.0, %v395
      %v400 = vmul.f32 %v382, %v396
      %v401 = vmul.f32 %v384, %v397
      %v402 = vmul.f32 %v388, %v398
      %v403 = vmul.f32 %v390, %v399
      %v404 = vmul.f32 %v400, 1.442695
      %v405 = vpow.pop %v404
      %v406 = vmul.f32 %v401, 1.442695
      %v407 = vpow.pop %v406
      %v408 = vmul.f32 %v402, 1.442695
      %v409 = vpow.pop %v408
      %v410 = vmul.f32 %v403, 1.442695
      %v411 = vpow.pop %v410
      %v412 = vld [vmem:[%s3] sm:$0xff]
      %v413 = vld [vmem:[%s3 + $0x8] sm:$0xff]
      %v414 = vld [vmem:[%s3 + $0x10] sm:$0xff]
      %v415 = vld [vmem:[%s3 + $0x18] sm:$0xff]
      %v416 = vld [vmem:[%s3 + $0x20] sm:$0xff]
      %v417 = vld [vmem:[%s3 + $0x28] sm:$0xff]
      %v418 = vld [vmem:[%s3 + $0x30] sm:$0xff]
      %v419 = vld [vmem:[%s3 + $0x38] sm:$0xff]
      %v420 = vld [vmem:[%s3 + $0x40] sm:$0xff]
      %v421 = vld [vmem:[%s3 + $0x48] sm:$0xff]
      %v422 = vld [vmem:[%s3 + $0x50] sm:$0xff]
      %v423 = vld [vmem:[%s3 + $0x58] sm:$0xff]
      %v424 = vld [vmem:[%s3 + $0x60] sm:$0xff]
      %v425 = vld [vmem:[%s3 + $0x68] sm:$0xff]
      %v426 = vld [vmem:[%s3 + $0x70] sm:$0xff]
      %v427 = vld [vmem:[%s3 + $0x78] sm:$0xff]
      %v428 = vld [vmem:[%s3 + $0x80] sm:$0xff]
      %v429 = vld [vmem:[%s3 + $0x88] sm:$0xff]
      %v430 = vld [vmem:[%s3 + $0x90] sm:$0xff]
      %v431 = vld [vmem:[%s3 + $0x98] sm:$0xff]
      %v432 = vld [vmem:[%s3 + $0xa0] sm:$0xff]
      %v433 = vld [vmem:[%s3 + $0xa8] sm:$0xff]
      %v434 = vld [vmem:[%s3 + $0xb0] sm:$0xff]
      %v435 = vld [vmem:[%s3 + $0xb8] sm:$0xff]
      %v436 = vld [vmem:[%s3 + $0xc0] sm:$0xff]
      %v437 = vld [vmem:[%s3 + $0xc8] sm:$0xff]
      %v438 = vld [vmem:[%s3 + $0xd0] sm:$0xff]
      %v439 = vld [vmem:[%s3 + $0xd8] sm:$0xff]
      %v440 = vld [vmem:[%s3 + $0xe0] sm:$0xff]
      %v441 = vld [vmem:[%s3 + $0xe8] sm:$0xff]
      %v442 = vld [vmem:[%s3 + $0xf0] sm:$0xff]
      %v443 = vld [vmem:[%s3 + $0xf8] sm:$0xff]
      %v444 = vld [vmem:[%s3 + $0x100] sm:$0xff]
      %v445 = vld [vmem:[%s3 + $0x108] sm:$0xff]
      %v446 = vld [vmem:[%s3 + $0x110] sm:$0xff]
      %v447 = vld [vmem:[%s3 + $0x118] sm:$0xff]
      %v448 = vld [vmem:[%s3 + $0x120] sm:$0xff]
      %v449 = vld [vmem:[%s3 + $0x128] sm:$0xff]
      %v450 = vld [vmem:[%s3 + $0x130] sm:$0xff]
      %v451 = vld [vmem:[%s3 + $0x138] sm:$0xff]
      %v452 = vld [vmem:[%s3 + $0x140] sm:$0xff]
      %v453 = vld [vmem:[%s3 + $0x148] sm:$0xff]
      %v454 = vld [vmem:[%s3 + $0x150] sm:$0xff]
      %v455 = vld [vmem:[%s3 + $0x158] sm:$0xff]
      %v456 = vld [vmem:[%s3 + $0x160] sm:$0xff]
      %v457 = vld [vmem:[%s3 + $0x168] sm:$0xff]
      %v458 = vld [vmem:[%s3 + $0x170] sm:$0xff]
      %v459 = vld [vmem:[%s3 + $0x178] sm:$0xff]
      %v460 = vld [vmem:[%s3 + $0x180] sm:$0xff]
      %v461 = vld [vmem:[%s3 + $0x188] sm:$0xff]
      %v462 = vld [vmem:[%s3 + $0x190] sm:$0xff]
      %v463 = vld [vmem:[%s3 + $0x198] sm:$0xff]
      %v464 = vld [vmem:[%s3 + $0x1a0] sm:$0xff]
      %v465 = vld [vmem:[%s3 + $0x1a8] sm:$0xff]
      %v466 = vld [vmem:[%s3 + $0x1b0] sm:$0xff]
      %v467 = vld [vmem:[%s3 + $0x1b8] sm:$0xff]
      %v468 = vld [vmem:[%s3 + $0x1c0] sm:$0xff]
      %v469 = vld [vmem:[%s3 + $0x1c8] sm:$0xff]
      %v470 = vld [vmem:[%s3 + $0x1d0] sm:$0xff]
      %v471 = vld [vmem:[%s3 + $0x1d8] sm:$0xff]
      %v472 = vld [vmem:[%s3 + $0x1e0] sm:$0xff]
      %v473 = vld [vmem:[%s3 + $0x1e8] sm:$0xff]
      %v474 = vld [vmem:[%s3 + $0x1f0] sm:$0xff]
      %v475 = vld [vmem:[%s3 + $0x1f8] sm:$0xff]
      %v476 = vld [vmem:[%s4] sm:$0x3]
      %v478 = vlaneseq
      %v479 = vshrl.u32 %v478, 7
      %v480 = vsub.s32 0, %v479
      %v481 = vrot.slane %v476, %v480
      %v482 = vlaneseq
      %v483 = vshrl.u32 %v482, 7
      %v484 = vsub.s32 1, %v483
      %v485 = vrot.slane %v476, %v484
      %488 = vmatprep.subr.mxu0 %v443
      %489 = vmatpush1.msra.mxu0 %v442
      %490 = vmatprep.subr.mxu0 %v441
      %491 = vmatpush1.msra.mxu0 %v440
      %492 = vmatprep.subr.mxu0 %v439
      %493 = vmatpush1.msra.mxu0 %v438
      %494 = vmatprep.subr.mxu0 %v437
      %495 = vmatpush1.msra.mxu0 %v436
      %496 = vmatprep.subr.mxu0 %v435
      %497 = vmatpush1.msra.mxu0 %v434
      %498 = vmatprep.subr.mxu0 %v433
      %499 = vmatpush1.msra.mxu0 %v432
      %500 = vmatprep.subr.mxu0 %v431
      %501 = vmatpush1.msra.mxu0 %v430
      %502 = vmatprep.subr.mxu0 %v429
      %503 = vmatpush1.msra.mxu0 %v428
      %504 = vmatprep.subr.mxu0 %v427
      %505 = vmatpush1.msra.mxu0 %v426
      %506 = vmatprep.subr.mxu0 %v425
      %507 = vmatpush1.msra.mxu0 %v424
      %508 = vmatprep.subr.mxu0 %v423
      %509 = vmatpush1.msra.mxu0 %v422
      %510 = vmatprep.subr.mxu0 %v421
      %511 = vmatpush1.msra.mxu0 %v420
      %512 = vmatprep.subr.mxu0 %v419
      %513 = vmatpush1.msra.mxu0 %v418
      %514 = vmatprep.subr.mxu0 %v417
      %515 = vmatpush1.msra.mxu0 %v416
      %516 = vmatprep.subr.mxu0 %v415
      %517 = vmatpush1.msra.mxu0 %v414
      %518 = vmatprep.subr.mxu0 %v413
      %519 = vmatpush1.msra.mxu0 %v412
      %520 = vmatprep.subr.mxu0 %v475
      %521 = vmatpush2.msra.mxu0 %v474
      %522 = vmatprep.subr.mxu0 %v473
      %523 = vmatpush2.msra.mxu0 %v472
      %524 = vmatprep.subr.mxu0 %v471
      %525 = vmatpush2.msra.mxu0 %v470
      %526 = vmatprep.subr.mxu0 %v469
      %527 = vmatpush2.msra.mxu0 %v468
      %528 = vmatprep.subr.mxu0 %v467
      %529 = vmatpush2.msra.mxu0 %v466
      %530 = vmatprep.subr.mxu0 %v465
      %531 = vmatpush2.msra.mxu0 %v464
      %532 = vmatprep.subr.mxu0 %v463
      %533 = vmatpush2.msra.mxu0 %v462
      %534 = vmatprep.subr.mxu0 %v461
      %535 = vmatpush2.msra.mxu0 %v460
      %536 = vmatprep.subr.mxu0 %v459
      %537 = vmatpush2.msra.mxu0 %v458
      %538 = vmatprep.subr.mxu0 %v457
      %539 = vmatpush2.msra.mxu0 %v456
      %540 = vmatprep.subr.mxu0 %v455
      %541 = vmatpush2.msra.mxu0 %v454
      %542 = vmatprep.subr.mxu0 %v453
      %543 = vmatpush2.msra.mxu0 %v452
      %544 = vmatprep.subr.mxu0 %v451
      %545 = vmatpush2.msra.mxu0 %v450
      %546 = vmatprep.subr.mxu0 %v449
      %547 = vmatpush2.msra.mxu0 %v448
      %548 = vmatprep.subr.mxu0 %v447
      %549 = vmatpush2.msra.mxu0 %v446
      %550 = vmatprep.subr.mxu0 %v445
      %551 = vmatpush2.msra.mxu0 %v444
      %552 = vmatprep.mubr.f32.mxu0 %v407
      %553 = vmatmul.mubr.f32.gmra.mxu0 %v405
      %v554 = vpop.f32.mrf.mxu0
      %v555 = vadd.f32 %v481, %v554
      %v556 = vpop.f32.mrf.mxu0
      %v557 = vadd.f32 %v485, %v556
      %558 = vmatprep.mubr.f32.mxu0 %v411
      %559 = vmatmul.mubr.f32.gmra.mxu0 %v409
      %v560 = vpop.f32.mrf.mxu0
      %v561 = vadd.f32 %v481, %v560
      %v562 = vpop.f32.mrf.mxu0
      %v563 = vadd.f32 %v485, %v562
      %564 = vdwg.mxu0
      %v565 = vmax.f32 %v555, 0.0
      %v566 = vmax.f32 %v557, 0.0
      %v567 = vmax.f32 %v561, 0.0
      %v568 = vmax.f32 %v563, 0.0
      %s569 = scalar_lea.vmem %s3, 512
      %v570 = vld [vmem:[%s569] sm:$0xff]
      %v571 = vld [vmem:[%s569 + $0x8] sm:$0xff]
      %v572 = vld [vmem:[%s569 + $0x10] sm:$0xff]
      %v573 = vld [vmem:[%s569 + $0x18] sm:$0xff]
      %v574 = vld [vmem:[%s569 + $0x20] sm:$0xff]
      %v575 = vld [vmem:[%s569 + $0x28] sm:$0xff]
      %v576 = vld [vmem:[%s569 + $0x30] sm:$0xff]
      %v577 = vld [vmem:[%s569 + $0x38] sm:$0xff]
      %v578 = vld [vmem:[%s569 + $0x40] sm:$0xff]
      %v579 = vld [vmem:[%s569 + $0x48] sm:$0xff]
      %v580 = vld [vmem:[%s569 + $0x50] sm:$0xff]
      %v581 = vld [vmem:[%s569 + $0x58] sm:$0xff]
      %v582 = vld [vmem:[%s569 + $0x60] sm:$0xff]
      %v583 = vld [vmem:[%s569 + $0x68] sm:$0xff]
      %v584 = vld [vmem:[%s569 + $0x70] sm:$0xff]
      %v585 = vld [vmem:[%s569 + $0x78] sm:$0xff]
      %v586 = vld [vmem:[%s569 + $0x80] sm:$0xff]
      %v587 = vld [vmem:[%s569 + $0x88] sm:$0xff]
      %v588 = vld [vmem:[%s569 + $0x90] sm:$0xff]
      %v589 = vld [vmem:[%s569 + $0x98] sm:$0xff]
      %v590 = vld [vmem:[%s569 + $0xa0] sm:$0xff]
      %v591 = vld [vmem:[%s569 + $0xa8] sm:$0xff]
      %v592 = vld [vmem:[%s569 + $0xb0] sm:$0xff]
      %v593 = vld [vmem:[%s569 + $0xb8] sm:$0xff]
      %v594 = vld [vmem:[%s569 + $0xc0] sm:$0xff]
      %v595 = vld [vmem:[%s569 + $0xc8] sm:$0xff]
      %v596 = vld [vmem:[%s569 + $0xd0] sm:$0xff]
      %v597 = vld [vmem:[%s569 + $0xd8] sm:$0xff]
      %v598 = vld [vmem:[%s569 + $0xe0] sm:$0xff]
      %v599 = vld [vmem:[%s569 + $0xe8] sm:$0xff]
      %v600 = vld [vmem:[%s569 + $0xf0] sm:$0xff]
      %v601 = vld [vmem:[%s569 + $0xf8] sm:$0xff]
      %v602 = vld [vmem:[%s569 + $0x100] sm:$0xff]
      %v603 = vld [vmem:[%s569 + $0x108] sm:$0xff]
      %v604 = vld [vmem:[%s569 + $0x110] sm:$0xff]
      %v605 = vld [vmem:[%s569 + $0x118] sm:$0xff]
      %v606 = vld [vmem:[%s569 + $0x120] sm:$0xff]
      %v607 = vld [vmem:[%s569 + $0x128] sm:$0xff]
      %v608 = vld [vmem:[%s569 + $0x130] sm:$0xff]
      %v609 = vld [vmem:[%s569 + $0x138] sm:$0xff]
      %v610 = vld [vmem:[%s569 + $0x140] sm:$0xff]
      %v611 = vld [vmem:[%s569 + $0x148] sm:$0xff]
      %v612 = vld [vmem:[%s569 + $0x150] sm:$0xff]
      %v613 = vld [vmem:[%s569 + $0x158] sm:$0xff]
      %v614 = vld [vmem:[%s569 + $0x160] sm:$0xff]
      %v615 = vld [vmem:[%s569 + $0x168] sm:$0xff]
      %v616 = vld [vmem:[%s569 + $0x170] sm:$0xff]
      %v617 = vld [vmem:[%s569 + $0x178] sm:$0xff]
      %v618 = vld [vmem:[%s569 + $0x180] sm:$0xff]
      %v619 = vld [vmem:[%s569 + $0x188] sm:$0xff]
      %v620 = vld [vmem:[%s569 + $0x190] sm:$0xff]
      %v621 = vld [vmem:[%s569 + $0x198] sm:$0xff]
      %v622 = vld [vmem:[%s569 + $0x1a0] sm:$0xff]
      %v623 = vld [vmem:[%s569 + $0x1a8] sm:$0xff]
      %v624 = vld [vmem:[%s569 + $0x1b0] sm:$0xff]
      %v625 = vld [vmem:[%s569 + $0x1b8] sm:$0xff]
      %v626 = vld [vmem:[%s569 + $0x1c0] sm:$0xff]
      %v627 = vld [vmem:[%s569 + $0x1c8] sm:$0xff]
      %v628 = vld [vmem:[%s569 + $0x1d0] sm:$0xff]
      %v629 = vld [vmem:[%s569 + $0x1d8] sm:$0xff]
      %v630 = vld [vmem:[%s569 + $0x1e0] sm:$0xff]
      %v631 = vld [vmem:[%s569 + $0x1e8] sm:$0xff]
      %v632 = vld [vmem:[%s569 + $0x1f0] sm:$0xff]
      %v633 = vld [vmem:[%s569 + $0x1f8] sm:$0xff]
      %s634 = scalar_lea.vmem %s4, 2
      %v635 = vld [vmem:[%s634] sm:$0x3]
      %v637 = vlaneseq
      %v638 = vshrl.u32 %v637, 7
      %v639 = vsub.s32 0, %v638
      %v640 = vrot.slane %v635, %v639
      %v641 = vlaneseq
      %v642 = vshrl.u32 %v641, 7
      %v643 = vsub.s32 1, %v642
      %v644 = vrot.slane %v635, %v643
      %647 = vmatprep.subr.mxu0 %v601
      %648 = vmatpush1.msra.mxu0 %v600
      %649 = vmatprep.subr.mxu0 %v599
      %650 = vmatpush1.msra.mxu0 %v598
      %651 = vmatprep.subr.mxu0 %v597
      %652 = vmatpush1.msra.mxu0 %v596
      %653 = vmatprep.subr.mxu0 %v595
      %654 = vmatpush1.msra.mxu0 %v594
      %655 = vmatprep.subr.mxu0 %v593
      %656 = vmatpush1.msra.mxu0 %v592
      %657 = vmatprep.subr.mxu0 %v591
      %658 = vmatpush1.msra.mxu0 %v590
      %659 = vmatprep.subr.mxu0 %v589
      %660 = vmatpush1.msra.mxu0 %v588
      %661 = vmatprep.subr.mxu0 %v587
      %662 = vmatpush1.msra.mxu0 %v586
      %663 = vmatprep.subr.mxu0 %v585
      %664 = vmatpush1.msra.mxu0 %v584
      %665 = vmatprep.subr.mxu0 %v583
      %666 = vmatpush1.msra.mxu0 %v582
      %667 = vmatprep.subr.mxu0 %v581
      %668 = vmatpush1.msra.mxu0 %v580
      %669 = vmatprep.subr.mxu0 %v579
      %670 = vmatpush1.msra.mxu0 %v578
      %671 = vmatprep.subr.mxu0 %v577
      %672 = vmatpush1.msra.mxu0 %v576
      %673 = vmatprep.subr.mxu0 %v575
      %674 = vmatpush1.msra.mxu0 %v574
      %675 = vmatprep.subr.mxu0 %v573
      %676 = vmatpush1.msra.mxu0 %v572
      %677 = vmatprep.subr.mxu0 %v571
      %678 = vmatpush1.msra.mxu0 %v570
      %679 = vmatprep.subr.mxu0 %v633
      %680 = vmatpush2.msra.mxu0 %v632
      %681 = vmatprep.subr.mxu0 %v631
      %682 = vmatpush2.msra.mxu0 %v630
      %683 = vmatprep.subr.mxu0 %v629
      %684 = vmatpush2.msra.mxu0 %v628
      %685 = vmatprep.subr.mxu0 %v627
      %686 = vmatpush2.msra.mxu0 %v626
      %687 = vmatprep.subr.mxu0 %v625
      %688 = vmatpush2.msra.mxu0 %v624
      %689 = vmatprep.subr.mxu0 %v623
      %690 = vmatpush2.msra.mxu0 %v622
      %691 = vmatprep.subr.mxu0 %v621
      %692 = vmatpush2.msra.mxu0 %v620
      %693 = vmatprep.subr.mxu0 %v619
      %694 = vmatpush2.msra.mxu0 %v618
      %695 = vmatprep.subr.mxu0 %v617
      %696 = vmatpush2.msra.mxu0 %v616
      %697 = vmatprep.subr.mxu0 %v615
      %698 = vmatpush2.msra.mxu0 %v614
      %699 = vmatprep.subr.mxu0 %v613
      %700 = vmatpush2.msra.mxu0 %v612
      %701 = vmatprep.subr.mxu0 %v611
      %702 = vmatpush2.msra.mxu0 %v610
      %703 = vmatprep.subr.mxu0 %v609
      %704 = vmatpush2.msra.mxu0 %v608
      %705 = vmatprep.subr.mxu0 %v607
      %706 = vmatpush2.msra.mxu0 %v606
      %707 = vmatprep.subr.mxu0 %v605
      %708 = vmatpush2.msra.mxu0 %v604
      %709 = vmatprep.subr.mxu0 %v603
      %710 = vmatpush2.msra.mxu0 %v602
      %711 = vmatprep.mubr.f32.mxu0 %v566
      %712 = vmatmul.mubr.f32.gmra.mxu0 %v565
      %v713 = vpop.f32.mrf.mxu0
      %v714 = vadd.f32 %v640, %v713
      %v715 = vpop.f32.mrf.mxu0
      %v716 = vadd.f32 %v644, %v715
      %717 = vmatprep.mubr.f32.mxu0 %v568
      %718 = vmatmul.mubr.f32.gmra.mxu0 %v567
      %v719 = vpop.f32.mrf.mxu0
      %v720 = vadd.f32 %v640, %v719
      %v721 = vpop.f32.mrf.mxu0
      %v722 = vadd.f32 %v644, %v721
      %723 = vdwg.mxu0
      %v724 = vmax.f32 %v714, 0.0
      %v725 = vmax.f32 %v716, 0.0
      %v726 = vmax.f32 %v720, 0.0
      %v727 = vmax.f32 %v722, 0.0
      %s728 = scalar_lea.vmem %s3, 1024
      %v729 = vld [vmem:[%s728] sm:$0xff]
      %v730 = vld [vmem:[%s728 + $0x8] sm:$0xff]
      %v731 = vld [vmem:[%s728 + $0x10] sm:$0xff]
      %v732 = vld [vmem:[%s728 + $0x18] sm:$0xff]
      %v733 = vld [vmem:[%s728 + $0x20] sm:$0xff]
      %v734 = vld [vmem:[%s728 + $0x28] sm:$0xff]
      %v735 = vld [vmem:[%s728 + $0x30] sm:$0xff]
      %v736 = vld [vmem:[%s728 + $0x38] sm:$0xff]
      %v737 = vld [vmem:[%s728 + $0x40] sm:$0xff]
      %v738 = vld [vmem:[%s728 + $0x48] sm:$0xff]
      %v739 = vld [vmem:[%s728 + $0x50] sm:$0xff]
      %v740 = vld [vmem:[%s728 + $0x58] sm:$0xff]
      %v741 = vld [vmem:[%s728 + $0x60] sm:$0xff]
      %v742 = vld [vmem:[%s728 + $0x68] sm:$0xff]
      %v743 = vld [vmem:[%s728 + $0x70] sm:$0xff]
      %v744 = vld [vmem:[%s728 + $0x78] sm:$0xff]
      %v745 = vld [vmem:[%s728 + $0x80] sm:$0xff]
      %v746 = vld [vmem:[%s728 + $0x88] sm:$0xff]
      %v747 = vld [vmem:[%s728 + $0x90] sm:$0xff]
      %v748 = vld [vmem:[%s728 + $0x98] sm:$0xff]
      %v749 = vld [vmem:[%s728 + $0xa0] sm:$0xff]
      %v750 = vld [vmem:[%s728 + $0xa8] sm:$0xff]
      %v751 = vld [vmem:[%s728 + $0xb0] sm:$0xff]
      %v752 = vld [vmem:[%s728 + $0xb8] sm:$0xff]
      %v753 = vld [vmem:[%s728 + $0xc0] sm:$0xff]
      %v754 = vld [vmem:[%s728 + $0xc8] sm:$0xff]
      %v755 = vld [vmem:[%s728 + $0xd0] sm:$0xff]
      %v756 = vld [vmem:[%s728 + $0xd8] sm:$0xff]
      %v757 = vld [vmem:[%s728 + $0xe0] sm:$0xff]
      %v758 = vld [vmem:[%s728 + $0xe8] sm:$0xff]
      %v759 = vld [vmem:[%s728 + $0xf0] sm:$0xff]
      %v760 = vld [vmem:[%s728 + $0xf8] sm:$0xff]
      %v761 = vld [vmem:[%s728 + $0x100] sm:$0xff]
      %v762 = vld [vmem:[%s728 + $0x108] sm:$0xff]
      %v763 = vld [vmem:[%s728 + $0x110] sm:$0xff]
      %v764 = vld [vmem:[%s728 + $0x118] sm:$0xff]
      %v765 = vld [vmem:[%s728 + $0x120] sm:$0xff]
      %v766 = vld [vmem:[%s728 + $0x128] sm:$0xff]
      %v767 = vld [vmem:[%s728 + $0x130] sm:$0xff]
      %v768 = vld [vmem:[%s728 + $0x138] sm:$0xff]
      %v769 = vld [vmem:[%s728 + $0x140] sm:$0xff]
      %v770 = vld [vmem:[%s728 + $0x148] sm:$0xff]
      %v771 = vld [vmem:[%s728 + $0x150] sm:$0xff]
      %v772 = vld [vmem:[%s728 + $0x158] sm:$0xff]
      %v773 = vld [vmem:[%s728 + $0x160] sm:$0xff]
      %v774 = vld [vmem:[%s728 + $0x168] sm:$0xff]
      %v775 = vld [vmem:[%s728 + $0x170] sm:$0xff]
      %v776 = vld [vmem:[%s728 + $0x178] sm:$0xff]
      %v777 = vld [vmem:[%s728 + $0x180] sm:$0xff]
      %v778 = vld [vmem:[%s728 + $0x188] sm:$0xff]
      %v779 = vld [vmem:[%s728 + $0x190] sm:$0xff]
      %v780 = vld [vmem:[%s728 + $0x198] sm:$0xff]
      %v781 = vld [vmem:[%s728 + $0x1a0] sm:$0xff]
      %v782 = vld [vmem:[%s728 + $0x1a8] sm:$0xff]
      %v783 = vld [vmem:[%s728 + $0x1b0] sm:$0xff]
      %v784 = vld [vmem:[%s728 + $0x1b8] sm:$0xff]
      %v785 = vld [vmem:[%s728 + $0x1c0] sm:$0xff]
      %v786 = vld [vmem:[%s728 + $0x1c8] sm:$0xff]
      %v787 = vld [vmem:[%s728 + $0x1d0] sm:$0xff]
      %v788 = vld [vmem:[%s728 + $0x1d8] sm:$0xff]
      %v789 = vld [vmem:[%s728 + $0x1e0] sm:$0xff]
      %v790 = vld [vmem:[%s728 + $0x1e8] sm:$0xff]
      %v791 = vld [vmem:[%s728 + $0x1f0] sm:$0xff]
      %v792 = vld [vmem:[%s728 + $0x1f8] sm:$0xff]
      %s793 = scalar_lea.vmem %s4, 4
      %v794 = vld [vmem:[%s793] sm:$0x3]
      %v796 = vlaneseq
      %v797 = vshrl.u32 %v796, 7
      %v798 = vsub.s32 0, %v797
      %v799 = vrot.slane %v794, %v798
      %v800 = vlaneseq
      %v801 = vshrl.u32 %v800, 7
      %v802 = vsub.s32 1, %v801
      %v803 = vrot.slane %v794, %v802
      %806 = vmatprep.subr.mxu0 %v760
      %807 = vmatpush1.msra.mxu0 %v759
      %808 = vmatprep.subr.mxu0 %v758
      %809 = vmatpush1.msra.mxu0 %v757
      %810 = vmatprep.subr.mxu0 %v756
      %811 = vmatpush1.msra.mxu0 %v755
      %812 = vmatprep.subr.mxu0 %v754
      %813 = vmatpush1.msra.mxu0 %v753
      %814 = vmatprep.subr.mxu0 %v752
      %815 = vmatpush1.msra.mxu0 %v751
      %816 = vmatprep.subr.mxu0 %v750
      %817 = vmatpush1.msra.mxu0 %v749
      %818 = vmatprep.subr.mxu0 %v748
      %819 = vmatpush1.msra.mxu0 %v747
      %820 = vmatprep.subr.mxu0 %v746
      %821 = vmatpush1.msra.mxu0 %v745
      %822 = vmatprep.subr.mxu0 %v744
      %823 = vmatpush1.msra.mxu0 %v743
      %824 = vmatprep.subr.mxu0 %v742
      %825 = vmatpush1.msra.mxu0 %v741
      %826 = vmatprep.subr.mxu0 %v740
      %827 = vmatpush1.msra.mxu0 %v739
      %828 = vmatprep.subr.mxu0 %v738
      %829 = vmatpush1.msra.mxu0 %v737
      %830 = vmatprep.subr.mxu0 %v736
      %831 = vmatpush1.msra.mxu0 %v735
      %832 = vmatprep.subr.mxu0 %v734
      %833 = vmatpush1.msra.mxu0 %v733
      %834 = vmatprep.subr.mxu0 %v732
      %835 = vmatpush1.msra.mxu0 %v731
      %836 = vmatprep.subr.mxu0 %v730
      %837 = vmatpush1.msra.mxu0 %v729
      %838 = vmatprep.subr.mxu0 %v792
      %839 = vmatpush2.msra.mxu0 %v791
      %840 = vmatprep.subr.mxu0 %v790
      %841 = vmatpush2.msra.mxu0 %v789
      %842 = vmatprep.subr.mxu0 %v788
      %843 = vmatpush2.msra.mxu0 %v787
      %844 = vmatprep.subr.mxu0 %v786
      %845 = vmatpush2.msra.mxu0 %v785
      %846 = vmatprep.subr.mxu0 %v784
      %847 = vmatpush2.msra.mxu0 %v783
      %848 = vmatprep.subr.mxu0 %v782
      %849 = vmatpush2.msra.mxu0 %v781
      %850 = vmatprep.subr.mxu0 %v780
      %851 = vmatpush2.msra.mxu0 %v779
      %852 = vmatprep.subr.mxu0 %v778
      %853 = vmatpush2.msra.mxu0 %v777
      %854 = vmatprep.subr.mxu0 %v776
      %855 = vmatpush2.msra.mxu0 %v775
      %856 = vmatprep.subr.mxu0 %v774
      %857 = vmatpush2.msra.mxu0 %v773
      %858 = vmatprep.subr.mxu0 %v772
      %859 = vmatpush2.msra.mxu0 %v771
      %860 = vmatprep.subr.mxu0 %v770
      %861 = vmatpush2.msra.mxu0 %v769
      %862 = vmatprep.subr.mxu0 %v768
      %863 = vmatpush2.msra.mxu0 %v767
      %864 = vmatprep.subr.mxu0 %v766
      %865 = vmatpush2.msra.mxu0 %v765
      %866 = vmatprep.subr.mxu0 %v764
      %867 = vmatpush2.msra.mxu0 %v763
      %868 = vmatprep.subr.mxu0 %v762
      %869 = vmatpush2.msra.mxu0 %v761
      %870 = vmatprep.mubr.f32.mxu0 %v725
      %871 = vmatmul.mubr.f32.gmra.mxu0 %v724
      %v872 = vpop.f32.mrf.mxu0
      %v873 = vadd.f32 %v799, %v872
      %v874 = vpop.f32.mrf.mxu0
      %v875 = vadd.f32 %v803, %v874
      %876 = vmatprep.mubr.f32.mxu0 %v727
      %877 = vmatmul.mubr.f32.gmra.mxu0 %v726
      %v878 = vpop.f32.mrf.mxu0
      %v879 = vadd.f32 %v799, %v878
      %v880 = vpop.f32.mrf.mxu0
      %v881 = vadd.f32 %v803, %v880
      %882 = vdwg.mxu0
      %v883 = vmax.f32 %v873, 0.0
      %v884 = vmax.f32 %v875, 0.0
      %v885 = vmax.f32 %v879, 0.0
      %v886 = vmax.f32 %v881, 0.0
      %s887 = scalar_lea.vmem %s3, 1536
      %v888 = vld [vmem:[%s887] sm:$0xff]
      %v889 = vld [vmem:[%s887 + $0x8] sm:$0xff]
      %v890 = vld [vmem:[%s887 + $0x10] sm:$0xff]
      %v891 = vld [vmem:[%s887 + $0x18] sm:$0xff]
      %v892 = vld [vmem:[%s887 + $0x20] sm:$0xff]
      %v893 = vld [vmem:[%s887 + $0x28] sm:$0xff]
      %v894 = vld [vmem:[%s887 + $0x30] sm:$0xff]
      %v895 = vld [vmem:[%s887 + $0x38] sm:$0xff]
      %v896 = vld [vmem:[%s887 + $0x40] sm:$0xff]
      %v897 = vld [vmem:[%s887 + $0x48] sm:$0xff]
      %v898 = vld [vmem:[%s887 + $0x50] sm:$0xff]
      %v899 = vld [vmem:[%s887 + $0x58] sm:$0xff]
      %v900 = vld [vmem:[%s887 + $0x60] sm:$0xff]
      %v901 = vld [vmem:[%s887 + $0x68] sm:$0xff]
      %v902 = vld [vmem:[%s887 + $0x70] sm:$0xff]
      %v903 = vld [vmem:[%s887 + $0x78] sm:$0xff]
      %v904 = vld [vmem:[%s887 + $0x80] sm:$0xff]
      %v905 = vld [vmem:[%s887 + $0x88] sm:$0xff]
      %v906 = vld [vmem:[%s887 + $0x90] sm:$0xff]
      %v907 = vld [vmem:[%s887 + $0x98] sm:$0xff]
      %v908 = vld [vmem:[%s887 + $0xa0] sm:$0xff]
      %v909 = vld [vmem:[%s887 + $0xa8] sm:$0xff]
      %v910 = vld [vmem:[%s887 + $0xb0] sm:$0xff]
      %v911 = vld [vmem:[%s887 + $0xb8] sm:$0xff]
      %v912 = vld [vmem:[%s887 + $0xc0] sm:$0xff]
      %v913 = vld [vmem:[%s887 + $0xc8] sm:$0xff]
      %v914 = vld [vmem:[%s887 + $0xd0] sm:$0xff]
      %v915 = vld [vmem:[%s887 + $0xd8] sm:$0xff]
      %v916 = vld [vmem:[%s887 + $0xe0] sm:$0xff]
      %v917 = vld [vmem:[%s887 + $0xe8] sm:$0xff]
      %v918 = vld [vmem:[%s887 + $0xf0] sm:$0xff]
      %v919 = vld [vmem:[%s887 + $0xf8] sm:$0xff]
      %v920 = vld [vmem:[%s887 + $0x100] sm:$0xff]
      %v921 = vld [vmem:[%s887 + $0x108] sm:$0xff]
      %v922 = vld [vmem:[%s887 + $0x110] sm:$0xff]
      %v923 = vld [vmem:[%s887 + $0x118] sm:$0xff]
      %v924 = vld [vmem:[%s887 + $0x120] sm:$0xff]
      %v925 = vld [vmem:[%s887 + $0x128] sm:$0xff]
      %v926 = vld [vmem:[%s887 + $0x130] sm:$0xff]
      %v927 = vld [vmem:[%s887 + $0x138] sm:$0xff]
      %v928 = vld [vmem:[%s887 + $0x140] sm:$0xff]
      %v929 = vld [vmem:[%s887 + $0x148] sm:$0xff]
      %v930 = vld [vmem:[%s887 + $0x150] sm:$0xff]
      %v931 = vld [vmem:[%s887 + $0x158] sm:$0xff]
      %v932 = vld [vmem:[%s887 + $0x160] sm:$0xff]
      %v933 = vld [vmem:[%s887 + $0x168] sm:$0xff]
      %v934 = vld [vmem:[%s887 + $0x170] sm:$0xff]
      %v935 = vld [vmem:[%s887 + $0x178] sm:$0xff]
      %v936 = vld [vmem:[%s887 + $0x180] sm:$0xff]
      %v937 = vld [vmem:[%s887 + $0x188] sm:$0xff]
      %v938 = vld [vmem:[%s887 + $0x190] sm:$0xff]
      %v939 = vld [vmem:[%s887 + $0x198] sm:$0xff]
      %v940 = vld [vmem:[%s887 + $0x1a0] sm:$0xff]
      %v941 = vld [vmem:[%s887 + $0x1a8] sm:$0xff]
      %v942 = vld [vmem:[%s887 + $0x1b0] sm:$0xff]
      %v943 = vld [vmem:[%s887 + $0x1b8] sm:$0xff]
      %v944 = vld [vmem:[%s887 + $0x1c0] sm:$0xff]
      %v945 = vld [vmem:[%s887 + $0x1c8] sm:$0xff]
      %v946 = vld [vmem:[%s887 + $0x1d0] sm:$0xff]
      %v947 = vld [vmem:[%s887 + $0x1d8] sm:$0xff]
      %v948 = vld [vmem:[%s887 + $0x1e0] sm:$0xff]
      %v949 = vld [vmem:[%s887 + $0x1e8] sm:$0xff]
      %v950 = vld [vmem:[%s887 + $0x1f0] sm:$0xff]
      %v951 = vld [vmem:[%s887 + $0x1f8] sm:$0xff]
      %s952 = scalar_lea.vmem %s4, 6
      %v953 = vld [vmem:[%s952] sm:$0x3]
      %v955 = vlaneseq
      %v956 = vshrl.u32 %v955, 7
      %v957 = vsub.s32 0, %v956
      %v958 = vrot.slane %v953, %v957
      %v959 = vlaneseq
      %v960 = vshrl.u32 %v959, 7
      %v961 = vsub.s32 1, %v960
      %v962 = vrot.slane %v953, %v961
      %965 = vmatprep.subr.mxu0 %v919
      %966 = vmatpush1.msra.mxu0 %v918
      %967 = vmatprep.subr.mxu0 %v917
      %968 = vmatpush1.msra.mxu0 %v916
      %969 = vmatprep.subr.mxu0 %v915
      %970 = vmatpush1.msra.mxu0 %v914
      %971 = vmatprep.subr.mxu0 %v913
      %972 = vmatpush1.msra.mxu0 %v912
      %973 = vmatprep.subr.mxu0 %v911
      %974 = vmatpush1.msra.mxu0 %v910
      %975 = vmatprep.subr.mxu0 %v909
      %976 = vmatpush1.msra.mxu0 %v908
      %977 = vmatprep.subr.mxu0 %v907
      %978 = vmatpush1.msra.mxu0 %v906
      %979 = vmatprep.subr.mxu0 %v905
      %980 = vmatpush1.msra.mxu0 %v904
      %981 = vmatprep.subr.mxu0 %v903
      %982 = vmatpush1.msra.mxu0 %v902
      %983 = vmatprep.subr.mxu0 %v901
      %984 = vmatpush1.msra.mxu0 %v900
      %985 = vmatprep.subr.mxu0 %v899
      %986 = vmatpush1.msra.mxu0 %v898
      %987 = vmatprep.subr.mxu0 %v897
      %988 = vmatpush1.msra.mxu0 %v896
      %989 = vmatprep.subr.mxu0 %v895
      %990 = vmatpush1.msra.mxu0 %v894
      %991 = vmatprep.subr.mxu0 %v893
      %992 = vmatpush1.msra.mxu0 %v892
      %993 = vmatprep.subr.mxu0 %v891
      %994 = vmatpush1.msra.mxu0 %v890
      %995 = vmatprep.subr.mxu0 %v889
      %996 = vmatpush1.msra.mxu0 %v888
      %997 = vmatprep.subr.mxu0 %v951
      %998 = vmatpush2.msra.mxu0 %v950
      %999 = vmatprep.subr.mxu0 %v949
      %1000 = vmatpush2.msra.mxu0 %v948
      %1001 = vmatprep.subr.mxu0 %v947
      %1002 = vmatpush2.msra.mxu0 %v946
      %1003 = vmatprep.subr.mxu0 %v945
      %1004 = vmatpush2.msra.mxu0 %v944
      %1005 = vmatprep.subr.mxu0 %v943
      %1006 = vmatpush2.msra.mxu0 %v942
      %1007 = vmatprep.subr.mxu0 %v941
      %1008 = vmatpush2.msra.mxu0 %v940
      %1009 = vmatprep.subr.mxu0 %v939
      %1010 = vmatpush2.msra.mxu0 %v938
      %1011 = vmatprep.subr.mxu0 %v937
      %1012 = vmatpush2.msra.mxu0 %v936
      %1013 = vmatprep.subr.mxu0 %v935
      %1014 = vmatpush2.msra.mxu0 %v934
      %1015 = vmatprep.subr.mxu0 %v933
      %1016 = vmatpush2.msra.mxu0 %v932
      %1017 = vmatprep.subr.mxu0 %v931
      %1018 = vmatpush2.msra.mxu0 %v930
      %1019 = vmatprep.subr.mxu0 %v929
      %1020 = vmatpush2.msra.mxu0 %v928
      %1021 = vmatprep.subr.mxu0 %v927
      %1022 = vmatpush2.msra.mxu0 %v926
      %1023 = vmatprep.subr.mxu0 %v925
      %1024 = vmatpush2.msra.mxu0 %v924
      %1025 = vmatprep.subr.mxu0 %v923
      %1026 = vmatpush2.msra.mxu0 %v922
      %1027 = vmatprep.subr.mxu0 %v921
      %1028 = vmatpush2.msra.mxu0 %v920
      %1029 = vmatprep.mubr.f32.mxu0 %v884
      %1030 = vmatmul.mubr.f32.gmra.mxu0 %v883
      %v1031 = vpop.f32.mrf.mxu0
      %v1032 = vadd.f32 %v958, %v1031
      %v1033 = vpop.f32.mrf.mxu0
      %v1034 = vadd.f32 %v962, %v1033
      %1035 = vmatprep.mubr.f32.mxu0 %v886
      %1036 = vmatmul.mubr.f32.gmra.mxu0 %v885
      %v1037 = vpop.f32.mrf.mxu0
      %v1038 = vadd.f32 %v958, %v1037
      %v1039 = vpop.f32.mrf.mxu0
      %v1040 = vadd.f32 %v962, %v1039
      %1041 = vdwg.mxu0
      %v1042 = vmax.f32 %v1032, 0.0
      %v1043 = vmax.f32 %v1034, 0.0
      %v1044 = vmax.f32 %v1038, 0.0
      %v1045 = vmax.f32 %v1040, 0.0
      %s1046 = scalar_lea.vmem %s3, 2048
      %v1047 = vld [vmem:[%s1046] sm:$0xff]
      %v1048 = vld [vmem:[%s1046 + $0x8] sm:$0xff]
      %v1049 = vld [vmem:[%s1046 + $0x10] sm:$0xff]
      %v1050 = vld [vmem:[%s1046 + $0x18] sm:$0xff]
      %v1051 = vld [vmem:[%s1046 + $0x20] sm:$0xff]
      %v1052 = vld [vmem:[%s1046 + $0x28] sm:$0xff]
      %v1053 = vld [vmem:[%s1046 + $0x30] sm:$0xff]
      %v1054 = vld [vmem:[%s1046 + $0x38] sm:$0xff]
      %v1055 = vld [vmem:[%s1046 + $0x40] sm:$0xff]
      %v1056 = vld [vmem:[%s1046 + $0x48] sm:$0xff]
      %v1057 = vld [vmem:[%s1046 + $0x50] sm:$0xff]
      %v1058 = vld [vmem:[%s1046 + $0x58] sm:$0xff]
      %v1059 = vld [vmem:[%s1046 + $0x60] sm:$0xff]
      %v1060 = vld [vmem:[%s1046 + $0x68] sm:$0xff]
      %v1061 = vld [vmem:[%s1046 + $0x70] sm:$0xff]
      %v1062 = vld [vmem:[%s1046 + $0x78] sm:$0xff]
      %v1063 = vld [vmem:[%s1046 + $0x80] sm:$0xff]
      %v1064 = vld [vmem:[%s1046 + $0x88] sm:$0xff]
      %v1065 = vld [vmem:[%s1046 + $0x90] sm:$0xff]
      %v1066 = vld [vmem:[%s1046 + $0x98] sm:$0xff]
      %v1067 = vld [vmem:[%s1046 + $0xa0] sm:$0xff]
      %v1068 = vld [vmem:[%s1046 + $0xa8] sm:$0xff]
      %v1069 = vld [vmem:[%s1046 + $0xb0] sm:$0xff]
      %v1070 = vld [vmem:[%s1046 + $0xb8] sm:$0xff]
      %v1071 = vld [vmem:[%s1046 + $0xc0] sm:$0xff]
      %v1072 = vld [vmem:[%s1046 + $0xc8] sm:$0xff]
      %v1073 = vld [vmem:[%s1046 + $0xd0] sm:$0xff]
      %v1074 = vld [vmem:[%s1046 + $0xd8] sm:$0xff]
      %v1075 = vld [vmem:[%s1046 + $0xe0] sm:$0xff]
      %v1076 = vld [vmem:[%s1046 + $0xe8] sm:$0xff]
      %v1077 = vld [vmem:[%s1046 + $0xf0] sm:$0xff]
      %v1078 = vld [vmem:[%s1046 + $0xf8] sm:$0xff]
      %v1079 = vld [vmem:[%s1046 + $0x100] sm:$0xff]
      %v1080 = vld [vmem:[%s1046 + $0x108] sm:$0xff]
      %v1081 = vld [vmem:[%s1046 + $0x110] sm:$0xff]
      %v1082 = vld [vmem:[%s1046 + $0x118] sm:$0xff]
      %v1083 = vld [vmem:[%s1046 + $0x120] sm:$0xff]
      %v1084 = vld [vmem:[%s1046 + $0x128] sm:$0xff]
      %v1085 = vld [vmem:[%s1046 + $0x130] sm:$0xff]
      %v1086 = vld [vmem:[%s1046 + $0x138] sm:$0xff]
      %v1087 = vld [vmem:[%s1046 + $0x140] sm:$0xff]
      %v1088 = vld [vmem:[%s1046 + $0x148] sm:$0xff]
      %v1089 = vld [vmem:[%s1046 + $0x150] sm:$0xff]
      %v1090 = vld [vmem:[%s1046 + $0x158] sm:$0xff]
      %v1091 = vld [vmem:[%s1046 + $0x160] sm:$0xff]
      %v1092 = vld [vmem:[%s1046 + $0x168] sm:$0xff]
      %v1093 = vld [vmem:[%s1046 + $0x170] sm:$0xff]
      %v1094 = vld [vmem:[%s1046 + $0x178] sm:$0xff]
      %v1095 = vld [vmem:[%s1046 + $0x180] sm:$0xff]
      %v1096 = vld [vmem:[%s1046 + $0x188] sm:$0xff]
      %v1097 = vld [vmem:[%s1046 + $0x190] sm:$0xff]
      %v1098 = vld [vmem:[%s1046 + $0x198] sm:$0xff]
      %v1099 = vld [vmem:[%s1046 + $0x1a0] sm:$0xff]
      %v1100 = vld [vmem:[%s1046 + $0x1a8] sm:$0xff]
      %v1101 = vld [vmem:[%s1046 + $0x1b0] sm:$0xff]
      %v1102 = vld [vmem:[%s1046 + $0x1b8] sm:$0xff]
      %v1103 = vld [vmem:[%s1046 + $0x1c0] sm:$0xff]
      %v1104 = vld [vmem:[%s1046 + $0x1c8] sm:$0xff]
      %v1105 = vld [vmem:[%s1046 + $0x1d0] sm:$0xff]
      %v1106 = vld [vmem:[%s1046 + $0x1d8] sm:$0xff]
      %v1107 = vld [vmem:[%s1046 + $0x1e0] sm:$0xff]
      %v1108 = vld [vmem:[%s1046 + $0x1e8] sm:$0xff]
      %v1109 = vld [vmem:[%s1046 + $0x1f0] sm:$0xff]
      %v1110 = vld [vmem:[%s1046 + $0x1f8] sm:$0xff]
      %s1111 = scalar_lea.vmem %s4, 8
      %v1112 = vld [vmem:[%s1111] sm:$0x3]
      %v1114 = vlaneseq
      %v1115 = vshrl.u32 %v1114, 7
      %v1116 = vsub.s32 0, %v1115
      %v1117 = vrot.slane %v1112, %v1116
      %v1118 = vlaneseq
      %v1119 = vshrl.u32 %v1118, 7
      %v1120 = vsub.s32 1, %v1119
      %v1121 = vrot.slane %v1112, %v1120
      %1124 = vmatprep.subr.mxu0 %v1078
      %1125 = vmatpush1.msra.mxu0 %v1077
      %1126 = vmatprep.subr.mxu0 %v1076
      %1127 = vmatpush1.msra.mxu0 %v1075
      %1128 = vmatprep.subr.mxu0 %v1074
      %1129 = vmatpush1.msra.mxu0 %v1073
      %1130 = vmatprep.subr.mxu0 %v1072
      %1131 = vmatpush1.msra.mxu0 %v1071
      %1132 = vmatprep.subr.mxu0 %v1070
      %1133 = vmatpush1.msra.mxu0 %v1069
      %1134 = vmatprep.subr.mxu0 %v1068
      %1135 = vmatpush1.msra.mxu0 %v1067
      %1136 = vmatprep.subr.mxu0 %v1066
      %1137 = vmatpush1.msra.mxu0 %v1065
      %1138 = vmatprep.subr.mxu0 %v1064
      %1139 = vmatpush1.msra.mxu0 %v1063
      %1140 = vmatprep.subr.mxu0 %v1062
      %1141 = vmatpush1.msra.mxu0 %v1061
      %1142 = vmatprep.subr.mxu0 %v1060
      %1143 = vmatpush1.msra.mxu0 %v1059
      %1144 = vmatprep.subr.mxu0 %v1058
      %1145 = vmatpush1.msra.mxu0 %v1057
      %1146 = vmatprep.subr.mxu0 %v1056
      %1147 = vmatpush1.msra.mxu0 %v1055
      %1148 = vmatprep.subr.mxu0 %v1054
      %1149 = vmatpush1.msra.mxu0 %v1053
      %1150 = vmatprep.subr.mxu0 %v1052
      %1151 = vmatpush1.msra.mxu0 %v1051
      %1152 = vmatprep.subr.mxu0 %v1050
      %1153 = vmatpush1.msra.mxu0 %v1049
      %1154 = vmatprep.subr.mxu0 %v1048
      %1155 = vmatpush1.msra.mxu0 %v1047
      %1156 = vmatprep.subr.mxu0 %v1110
      %1157 = vmatpush2.msra.mxu0 %v1109
      %1158 = vmatprep.subr.mxu0 %v1108
      %1159 = vmatpush2.msra.mxu0 %v1107
      %1160 = vmatprep.subr.mxu0 %v1106
      %1161 = vmatpush2.msra.mxu0 %v1105
      %1162 = vmatprep.subr.mxu0 %v1104
      %1163 = vmatpush2.msra.mxu0 %v1103
      %1164 = vmatprep.subr.mxu0 %v1102
      %1165 = vmatpush2.msra.mxu0 %v1101
      %1166 = vmatprep.subr.mxu0 %v1100
      %1167 = vmatpush2.msra.mxu0 %v1099
      %1168 = vmatprep.subr.mxu0 %v1098
      %1169 = vmatpush2.msra.mxu0 %v1097
      %1170 = vmatprep.subr.mxu0 %v1096
      %1171 = vmatpush2.msra.mxu0 %v1095
      %1172 = vmatprep.subr.mxu0 %v1094
      %1173 = vmatpush2.msra.mxu0 %v1093
      %1174 = vmatprep.subr.mxu0 %v1092
      %1175 = vmatpush2.msra.mxu0 %v1091
      %1176 = vmatprep.subr.mxu0 %v1090
      %1177 = vmatpush2.msra.mxu0 %v1089
      %1178 = vmatprep.subr.mxu0 %v1088
      %1179 = vmatpush2.msra.mxu0 %v1087
      %1180 = vmatprep.subr.mxu0 %v1086
      %1181 = vmatpush2.msra.mxu0 %v1085
      %1182 = vmatprep.subr.mxu0 %v1084
      %1183 = vmatpush2.msra.mxu0 %v1083
      %1184 = vmatprep.subr.mxu0 %v1082
      %1185 = vmatpush2.msra.mxu0 %v1081
      %1186 = vmatprep.subr.mxu0 %v1080
      %1187 = vmatpush2.msra.mxu0 %v1079
      %1188 = vmatprep.mubr.f32.mxu0 %v1043
      %1189 = vmatmul.mubr.f32.gmra.mxu0 %v1042
      %v1190 = vpop.f32.mrf.mxu0
      %v1191 = vadd.f32 %v1117, %v1190
      %v1192 = vpop.f32.mrf.mxu0
      %v1193 = vadd.f32 %v1121, %v1192
      %1194 = vmatprep.mubr.f32.mxu0 %v1045
      %1195 = vmatmul.mubr.f32.gmra.mxu0 %v1044
      %v1196 = vpop.f32.mrf.mxu0
      %v1197 = vadd.f32 %v1117, %v1196
      %v1198 = vpop.f32.mrf.mxu0
      %v1199 = vadd.f32 %v1121, %v1198
      %1200 = vdwg.mxu0
      %v1201 = vmax.f32 %v1191, 0.0
      %v1202 = vmax.f32 %v1193, 0.0
      %v1203 = vmax.f32 %v1197, 0.0
      %v1204 = vmax.f32 %v1199, 0.0
      %s1205 = scalar_lea.vmem %s3, 2560
      %v1206 = vld [vmem:[%s1205] sm:$0xff]
      %v1207 = vld [vmem:[%s1205 + $0x8] sm:$0xff]
      %v1208 = vld [vmem:[%s1205 + $0x10] sm:$0xff]
      %v1209 = vld [vmem:[%s1205 + $0x18] sm:$0xff]
      %v1210 = vld [vmem:[%s1205 + $0x20] sm:$0xff]
      %v1211 = vld [vmem:[%s1205 + $0x28] sm:$0xff]
      %v1212 = vld [vmem:[%s1205 + $0x30] sm:$0xff]
      %v1213 = vld [vmem:[%s1205 + $0x38] sm:$0xff]
      %v1214 = vld [vmem:[%s1205 + $0x40] sm:$0xff]
      %v1215 = vld [vmem:[%s1205 + $0x48] sm:$0xff]
      %v1216 = vld [vmem:[%s1205 + $0x50] sm:$0xff]
      %v1217 = vld [vmem:[%s1205 + $0x58] sm:$0xff]
      %v1218 = vld [vmem:[%s1205 + $0x60] sm:$0xff]
      %v1219 = vld [vmem:[%s1205 + $0x68] sm:$0xff]
      %v1220 = vld [vmem:[%s1205 + $0x70] sm:$0xff]
      %v1221 = vld [vmem:[%s1205 + $0x78] sm:$0xff]
      %v1222 = vld [vmem:[%s1205 + $0x80] sm:$0xff]
      %v1223 = vld [vmem:[%s1205 + $0x88] sm:$0xff]
      %v1224 = vld [vmem:[%s1205 + $0x90] sm:$0xff]
      %v1225 = vld [vmem:[%s1205 + $0x98] sm:$0xff]
      %v1226 = vld [vmem:[%s1205 + $0xa0] sm:$0xff]
      %v1227 = vld [vmem:[%s1205 + $0xa8] sm:$0xff]
      %v1228 = vld [vmem:[%s1205 + $0xb0] sm:$0xff]
      %v1229 = vld [vmem:[%s1205 + $0xb8] sm:$0xff]
      %v1230 = vld [vmem:[%s1205 + $0xc0] sm:$0xff]
      %v1231 = vld [vmem:[%s1205 + $0xc8] sm:$0xff]
      %v1232 = vld [vmem:[%s1205 + $0xd0] sm:$0xff]
      %v1233 = vld [vmem:[%s1205 + $0xd8] sm:$0xff]
      %v1234 = vld [vmem:[%s1205 + $0xe0] sm:$0xff]
      %v1235 = vld [vmem:[%s1205 + $0xe8] sm:$0xff]
      %v1236 = vld [vmem:[%s1205 + $0xf0] sm:$0xff]
      %v1237 = vld [vmem:[%s1205 + $0xf8] sm:$0xff]
      %v1238 = vld [vmem:[%s1205 + $0x100] sm:$0xff]
      %v1239 = vld [vmem:[%s1205 + $0x108] sm:$0xff]
      %v1240 = vld [vmem:[%s1205 + $0x110] sm:$0xff]
      %v1241 = vld [vmem:[%s1205 + $0x118] sm:$0xff]
      %v1242 = vld [vmem:[%s1205 + $0x120] sm:$0xff]
      %v1243 = vld [vmem:[%s1205 + $0x128] sm:$0xff]
      %v1244 = vld [vmem:[%s1205 + $0x130] sm:$0xff]
      %v1245 = vld [vmem:[%s1205 + $0x138] sm:$0xff]
      %v1246 = vld [vmem:[%s1205 + $0x140] sm:$0xff]
      %v1247 = vld [vmem:[%s1205 + $0x148] sm:$0xff]
      %v1248 = vld [vmem:[%s1205 + $0x150] sm:$0xff]
      %v1249 = vld [vmem:[%s1205 + $0x158] sm:$0xff]
      %v1250 = vld [vmem:[%s1205 + $0x160] sm:$0xff]
      %v1251 = vld [vmem:[%s1205 + $0x168] sm:$0xff]
      %v1252 = vld [vmem:[%s1205 + $0x170] sm:$0xff]
      %v1253 = vld [vmem:[%s1205 + $0x178] sm:$0xff]
      %v1254 = vld [vmem:[%s1205 + $0x180] sm:$0xff]
      %v1255 = vld [vmem:[%s1205 + $0x188] sm:$0xff]
      %v1256 = vld [vmem:[%s1205 + $0x190] sm:$0xff]
      %v1257 = vld [vmem:[%s1205 + $0x198] sm:$0xff]
      %v1258 = vld [vmem:[%s1205 + $0x1a0] sm:$0xff]
      %v1259 = vld [vmem:[%s1205 + $0x1a8] sm:$0xff]
      %v1260 = vld [vmem:[%s1205 + $0x1b0] sm:$0xff]
      %v1261 = vld [vmem:[%s1205 + $0x1b8] sm:$0xff]
      %v1262 = vld [vmem:[%s1205 + $0x1c0] sm:$0xff]
      %v1263 = vld [vmem:[%s1205 + $0x1c8] sm:$0xff]
      %v1264 = vld [vmem:[%s1205 + $0x1d0] sm:$0xff]
      %v1265 = vld [vmem:[%s1205 + $0x1d8] sm:$0xff]
      %v1266 = vld [vmem:[%s1205 + $0x1e0] sm:$0xff]
      %v1267 = vld [vmem:[%s1205 + $0x1e8] sm:$0xff]
      %v1268 = vld [vmem:[%s1205 + $0x1f0] sm:$0xff]
      %v1269 = vld [vmem:[%s1205 + $0x1f8] sm:$0xff]
      %s1270 = scalar_lea.vmem %s4, 10
      %v1271 = vld [vmem:[%s1270] sm:$0x3]
      %v1273 = vlaneseq
      %v1274 = vshrl.u32 %v1273, 7
      %v1275 = vsub.s32 0, %v1274
      %v1276 = vrot.slane %v1271, %v1275
      %v1277 = vlaneseq
      %v1278 = vshrl.u32 %v1277, 7
      %v1279 = vsub.s32 1, %v1278
      %v1280 = vrot.slane %v1271, %v1279
      %1283 = vmatprep.subr.mxu0 %v1237
      %1284 = vmatpush1.msra.mxu0 %v1236
      %1285 = vmatprep.subr.mxu0 %v1235
      %1286 = vmatpush1.msra.mxu0 %v1234
      %1287 = vmatprep.subr.mxu0 %v1233
      %1288 = vmatpush1.msra.mxu0 %v1232
      %1289 = vmatprep.subr.mxu0 %v1231
      %1290 = vmatpush1.msra.mxu0 %v1230
      %1291 = vmatprep.subr.mxu0 %v1229
      %1292 = vmatpush1.msra.mxu0 %v1228
      %1293 = vmatprep.subr.mxu0 %v1227
      %1294 = vmatpush1.msra.mxu0 %v1226
      %1295 = vmatprep.subr.mxu0 %v1225
      %1296 = vmatpush1.msra.mxu0 %v1224
      %1297 = vmatprep.subr.mxu0 %v1223
      %1298 = vmatpush1.msra.mxu0 %v1222
      %1299 = vmatprep.subr.mxu0 %v1221
      %1300 = vmatpush1.msra.mxu0 %v1220
      %1301 = vmatprep.subr.mxu0 %v1219
      %1302 = vmatpush1.msra.mxu0 %v1218
      %1303 = vmatprep.subr.mxu0 %v1217
      %1304 = vmatpush1.msra.mxu0 %v1216
      %1305 = vmatprep.subr.mxu0 %v1215
      %1306 = vmatpush1.msra.mxu0 %v1214
      %1307 = vmatprep.subr.mxu0 %v1213
      %1308 = vmatpush1.msra.mxu0 %v1212
      %1309 = vmatprep.subr.mxu0 %v1211
      %1310 = vmatpush1.msra.mxu0 %v1210
      %1311 = vmatprep.subr.mxu0 %v1209
      %1312 = vmatpush1.msra.mxu0 %v1208
      %1313 = vmatprep.subr.mxu0 %v1207
      %1314 = vmatpush1.msra.mxu0 %v1206
      %1315 = vmatprep.subr.mxu0 %v1269
      %1316 = vmatpush2.msra.mxu0 %v1268
      %1317 = vmatprep.subr.mxu0 %v1267
      %1318 = vmatpush2.msra.mxu0 %v1266
      %1319 = vmatprep.subr.mxu0 %v1265
      %1320 = vmatpush2.msra.mxu0 %v1264
      %1321 = vmatprep.subr.mxu0 %v1263
      %1322 = vmatpush2.msra.mxu0 %v1262
      %1323 = vmatprep.subr.mxu0 %v1261
      %1324 = vmatpush2.msra.mxu0 %v1260
      %1325 = vmatprep.subr.mxu0 %v1259
      %1326 = vmatpush2.msra.mxu0 %v1258
      %1327 = vmatprep.subr.mxu0 %v1257
      %1328 = vmatpush2.msra.mxu0 %v1256
      %1329 = vmatprep.subr.mxu0 %v1255
      %1330 = vmatpush2.msra.mxu0 %v1254
      %1331 = vmatprep.subr.mxu0 %v1253
      %1332 = vmatpush2.msra.mxu0 %v1252
      %1333 = vmatprep.subr.mxu0 %v1251
      %1334 = vmatpush2.msra.mxu0 %v1250
      %1335 = vmatprep.subr.mxu0 %v1249
      %1336 = vmatpush2.msra.mxu0 %v1248
      %1337 = vmatprep.subr.mxu0 %v1247
      %1338 = vmatpush2.msra.mxu0 %v1246
      %1339 = vmatprep.subr.mxu0 %v1245
      %1340 = vmatpush2.msra.mxu0 %v1244
      %1341 = vmatprep.subr.mxu0 %v1243
      %1342 = vmatpush2.msra.mxu0 %v1242
      %1343 = vmatprep.subr.mxu0 %v1241
      %1344 = vmatpush2.msra.mxu0 %v1240
      %1345 = vmatprep.subr.mxu0 %v1239
      %1346 = vmatpush2.msra.mxu0 %v1238
      %1347 = vmatprep.mubr.f32.mxu0 %v1202
      %1348 = vmatmul.mubr.f32.gmra.mxu0 %v1201
      %v1349 = vpop.f32.mrf.mxu0
      %v1350 = vadd.f32 %v1276, %v1349
      %v1351 = vpop.f32.mrf.mxu0
      %v1352 = vadd.f32 %v1280, %v1351
      %1353 = vmatprep.mubr.f32.mxu0 %v1204
      %1354 = vmatmul.mubr.f32.gmra.mxu0 %v1203
      %v1355 = vpop.f32.mrf.mxu0
      %v1356 = vadd.f32 %v1276, %v1355
      %v1357 = vpop.f32.mrf.mxu0
      %v1358 = vadd.f32 %v1280, %v1357
      %1359 = vdwg.mxu0
      %v1360 = vmax.f32 %v1350, 0.0
      %v1361 = vmax.f32 %v1352, 0.0
      %v1362 = vmax.f32 %v1356, 0.0
      %v1363 = vmax.f32 %v1358, 0.0
      %v1364 = vld [vmem:[%s5] sm:$0xff]
      %v1365 = vld [vmem:[%s5 + $0x8] sm:$0xff]
      %v1366 = vld [vmem:[%s5 + $0x10] sm:$0xff]
      %v1367 = vld [vmem:[%s5 + $0x18] sm:$0xff]
      %v1368 = vld [vmem:[%s5 + $0x20] sm:$0xff]
      %v1369 = vld [vmem:[%s5 + $0x28] sm:$0xff]
      %v1370 = vld [vmem:[%s5 + $0x30] sm:$0xff]
      %v1371 = vld [vmem:[%s5 + $0x38] sm:$0xff]
      %v1372 = vld [vmem:[%s5 + $0x40] sm:$0xff]
      %v1373 = vld [vmem:[%s5 + $0x48] sm:$0xff]
      %v1374 = vld [vmem:[%s5 + $0x50] sm:$0xff]
      %v1375 = vld [vmem:[%s5 + $0x58] sm:$0xff]
      %v1376 = vld [vmem:[%s5 + $0x60] sm:$0xff]
      %v1377 = vld [vmem:[%s5 + $0x68] sm:$0xff]
      %v1378 = vld [vmem:[%s5 + $0x70] sm:$0xff]
      %v1379 = vld [vmem:[%s5 + $0x78] sm:$0xff]
      %v1380 = vld [vmem:[%s5 + $0x80] sm:$0xff]
      %v1381 = vld [vmem:[%s5 + $0x88] sm:$0xff]
      %v1382 = vld [vmem:[%s5 + $0x90] sm:$0xff]
      %v1383 = vld [vmem:[%s5 + $0x98] sm:$0xff]
      %v1384 = vld [vmem:[%s5 + $0xa0] sm:$0xff]
      %v1385 = vld [vmem:[%s5 + $0xa8] sm:$0xff]
      %v1386 = vld [vmem:[%s5 + $0xb0] sm:$0xff]
      %v1387 = vld [vmem:[%s5 + $0xb8] sm:$0xff]
      %v1388 = vld [vmem:[%s5 + $0xc0] sm:$0xff]
      %v1389 = vld [vmem:[%s5 + $0xc8] sm:$0xff]
      %v1390 = vld [vmem:[%s5 + $0xd0] sm:$0xff]
      %v1391 = vld [vmem:[%s5 + $0xd8] sm:$0xff]
      %v1392 = vld [vmem:[%s5 + $0xe0] sm:$0xff]
      %v1393 = vld [vmem:[%s5 + $0xe8] sm:$0xff]
      %v1394 = vld [vmem:[%s5 + $0xf0] sm:$0xff]
      %v1395 = vld [vmem:[%s5 + $0xf8] sm:$0xff]
      %v1396 = vld [vmem:[%s6] sm:$0x1]
      %v1398 = vlaneseq
      %v1399 = vshrl.u32 %v1398, 7
      %v1400 = vsub.s32 0, %v1399
      %v1401 = vrot.slane %v1396, %v1400
      %1403 = vmatprep.subr.mxu0 0.0
      %1404 = vmatpush1.msra.mxu0 %v1379
      %1405 = vmatprep.subr.mxu0 0.0
      %1406 = vmatpush1.msra.mxu0 %v1378
      %1407 = vmatprep.subr.mxu0 0.0
      %1408 = vmatpush1.msra.mxu0 %v1377
      %1409 = vmatprep.subr.mxu0 0.0
      %1410 = vmatpush1.msra.mxu0 %v1376
      %1411 = vmatprep.subr.mxu0 0.0
      %1412 = vmatpush1.msra.mxu0 %v1375
      %1413 = vmatprep.subr.mxu0 0.0
      %1414 = vmatpush1.msra.mxu0 %v1374
      %1415 = vmatprep.subr.mxu0 0.0
      %1416 = vmatpush1.msra.mxu0 %v1373
      %1417 = vmatprep.subr.mxu0 0.0
      %1418 = vmatpush1.msra.mxu0 %v1372
      %1419 = vmatprep.subr.mxu0 0.0
      %1420 = vmatpush1.msra.mxu0 %v1371
      %1421 = vmatprep.subr.mxu0 0.0
      %1422 = vmatpush1.msra.mxu0 %v1370
      %1423 = vmatprep.subr.mxu0 0.0
      %1424 = vmatpush1.msra.mxu0 %v1369
      %1425 = vmatprep.subr.mxu0 0.0
      %1426 = vmatpush1.msra.mxu0 %v1368
      %1427 = vmatprep.subr.mxu0 0.0
      %1428 = vmatpush1.msra.mxu0 %v1367
      %1429 = vmatprep.subr.mxu0 0.0
      %1430 = vmatpush1.msra.mxu0 %v1366
      %1431 = vmatprep.subr.mxu0 0.0
      %1432 = vmatpush1.msra.mxu0 %v1365
      %1433 = vmatprep.subr.mxu0 0.0
      %1434 = vmatpush1.msra.mxu0 %v1364
      %1435 = vmatprep.subr.mxu0 0.0
      %1436 = vmatpush2.msra.mxu0 %v1395
      %1437 = vmatprep.subr.mxu0 0.0
      %1438 = vmatpush2.msra.mxu0 %v1394
      %1439 = vmatprep.subr.mxu0 0.0
      %1440 = vmatpush2.msra.mxu0 %v1393
      %1441 = vmatprep.subr.mxu0 0.0
      %1442 = vmatpush2.msra.mxu0 %v1392
      %1443 = vmatprep.subr.mxu0 0.0
      %1444 = vmatpush2.msra.mxu0 %v1391
      %1445 = vmatprep.subr.mxu0 0.0
      %1446 = vmatpush2.msra.mxu0 %v1390
      %1447 = vmatprep.subr.mxu0 0.0
      %1448 = vmatpush2.msra.mxu0 %v1389
      %1449 = vmatprep.subr.mxu0 0.0
      %1450 = vmatpush2.msra.mxu0 %v1388
      %1451 = vmatprep.subr.mxu0 0.0
      %1452 = vmatpush2.msra.mxu0 %v1387
      %1453 = vmatprep.subr.mxu0 0.0
      %1454 = vmatpush2.msra.mxu0 %v1386
      %1455 = vmatprep.subr.mxu0 0.0
      %1456 = vmatpush2.msra.mxu0 %v1385
      %1457 = vmatprep.subr.mxu0 0.0
      %1458 = vmatpush2.msra.mxu0 %v1384
      %1459 = vmatprep.subr.mxu0 0.0
      %1460 = vmatpush2.msra.mxu0 %v1383
      %1461 = vmatprep.subr.mxu0 0.0
      %1462 = vmatpush2.msra.mxu0 %v1382
      %1463 = vmatprep.subr.mxu0 0.0
      %1464 = vmatpush2.msra.mxu0 %v1381
      %1465 = vmatprep.subr.mxu0 0.0
      %1466 = vmatpush2.msra.mxu0 %v1380
      %1467 = vmatprep.mubr.f32.mxu0 %v1361
      %1468 = vmatmul.mubr.f32.gmra.mxu0 %v1360
      %v1469 = vpop.f32.mrf.mxu0
      %v1470 = vadd.f32 %v1401, %v1469
      %v1471 = vpop.f32.mrf.mxu0
      %1472 = vmatprep.mubr.f32.mxu0 %v1363
      %1473 = vmatmul.mubr.f32.gmra.mxu0 %v1362
      %v1474 = vpop.f32.mrf.mxu0
      %v1475 = vadd.f32 %v1401, %v1474
      %v1476 = vpop.f32.mrf.mxu0
      %1477 = vdwg.mxu0
      %1478 = vst [vmem:[%s280] sm:$0xff] %v1470
      %1479 = vst [vmem:[%s280 + $0x8] sm:$0xff] %v1475
      %s1480 = smul.u32 2, %s18
      %p1481 = scmp.lt.s32.totalorder %s1480, 3
      %s1482 = scalar_select %p1481, %s1480, 3
      %s1483 = smul.addr %s1482, 8
      %s1484 = scalar_lea.vmem %s7, %s1483
      // Predicated region
      $region49: #{neulf_wire_forward.1} parent=47 // pred_check
        %p1485 = pneg %p188
      $region50: #{neulf_wire_forward.1} parent=47 // pred_check_branch
        %1487 = sbr.rel (%p1485) target = $region52
      $region51: #{neulf_wire_forward.1} parent=47 // pred_region
        %s1488 = smul.u32 2, %s18
      $region52: #{neulf_wire_forward.1} parent=47 // pred_fallthru
        _
    $region48: #{neulf_wire_forward.1} parent=5 // pred_fallthru
      _
    %p1489 = scmp.le.s32.totalorder 2, %s13
    // Predicated region
    $region53: #{neulf_wire_forward.1} parent=5 // pred_check
      %p1490 = pneg %p1489
    $region54: #{neulf_wire_forward.1} parent=5 // pred_check_branch
      %1492 = sbr.rel (%p1490) target = $region56
    $region55: #{neulf_wire_forward.1} parent=5 // pred_region
      %s1493 = ssub.s32 %s13, 2
      // Predicated region
      $region57: #{neulf_wire_forward.1} parent=55 // pred_check
        %p1494 = pneg %p194
      $region58: #{neulf_wire_forward.1} parent=55 // pred_check_branch
        %1496 = sbr.rel (%p1494) target = $region60
      $region59: #{neulf_wire_forward.1} parent=55 // pred_region
        %s1497 = smul.u32 2, %s19
        %p1498 = scmp.lt.s32.totalorder %s1497, 3
        %s1499 = scalar_select %p1498, %s1497, 3
        %s1500 = smul.addr %s1499, 8
        %s1501 = scalar_lea.vmem %s7, %s1500
      $region60: #{neulf_wire_forward.1} parent=55 // pred_fallthru
        _
    $region56: #{neulf_wire_forward.1} parent=5 // pred_fallthru
      _
  $region6: #{neulf_wire_forward.1} parent=0 // loop_footer
    %s17 = sadd.s32 1, %s13
  $region7: #{neulf_wire_forward.1} parent=0 // loop_footer_branch
    %12 = sbr.rel target = $region3
  $region8: #{neulf_wire_forward.1} parent=0 // loop_exit
    _

</llo_original>
